<compile_context>
chip_gen: v6e
topology: v6e:2x2x1
jax: 0.10.0
libtpu: 0.0.40
codegen_flags: <defaults>
</compile_context>

<pallas_src>
import functools

import jax
import jax.numpy as jnp
from jax.experimental import pallas as pl
from jax.experimental.pallas import tpu as pltpu


def flowstep_kernel(
    x_ref,      # (1, C, TR)    VMEM — channels on sublanes, time on lanes
    cond_ref,   # (1, Cc, TR)   VMEM
    wz_ref,     # (C, C)    fused ActNorm + invconv (channels-first orientation)
    bz_ref,     # (C, 1)
    w1x_ref,    # (H, C)    first coupling Linear with z1's affine map folded in
    w1c_ref,    # (H, Cc)   first coupling Linear, cond rows
    b1_ref,     # (H, 1)
    w2_ref,     # (H, H)
    b2_ref,     # (H, 1)
    w3_ref,     # (2*C2, H) output Linear, rows permuted: shift rows then scale rows
    b3_ref,     # (2*C2, 1)
    z_out_ref,  # (1, C, TR)    VMEM out
    ld_ref,     # (1, 1, 1, 1)  VMEM out — per-(batch, tile) sum(log(scale)) partial
    *,
    total_t,    # static: logical sequence length (for tail masking)
):
    t = pl.program_id(1)
    x = x_ref[0]            # (C, TR)
    cond = cond_ref[0]      # (Cc, TR)
    C, TR = x.shape
    C1 = C // 2
    C2 = C - C1
    f32 = jnp.float32

    # ActNorm + InvertibleConv1x1 folded into one (C, C) matmul; output is lane-dense.
    z = jnp.dot(wz_ref[...], x, preferred_element_type=f32) + bz_ref[...]

    # Coupling net f = Linear -> ReLU -> Linear -> ReLU -> LinearZeroInit.
    # z1's affine map is folded into w1x/b1 in the wrapper, so this reads x directly
    # and has no serial dependency on the conv matmul above.
    h = (jnp.dot(w1x_ref[...], x, preferred_element_type=f32)
         + jnp.dot(w1c_ref[...], cond, preferred_element_type=f32)
         + b1_ref[...])
    h = jnp.maximum(h, 0.0)
    h = jnp.maximum(
        jnp.dot(w2_ref[...], h, preferred_element_type=f32) + b2_ref[...], 0.0)

    # Single output matmul; rows pre-permuted so the 'cross' split is a contiguous
    # sublane slice (shift rows first, then scale rows).
    out = jnp.dot(w3_ref[...], h, preferred_element_type=f32) + b3_ref[...]
    shift = out[:C2]
    s_pre = out[C2:]

    # sigmoid(y) == 0.5*(tanh(y/2)+1): exact identity, transcendental on the EUP.
    scale = 0.5 * (jnp.tanh(0.5 * (s_pre + 2.0)) + 1.0) + 1e-6

    z2 = (z[C1:] + shift) * scale

    # Assemble the full (C, TR) block and do one lane-dense store.
    z_out_ref[0] = jnp.concatenate([z[:C1], z2], axis=0).astype(z_out_ref.dtype)

    # Per-(batch, tile) logdet partial; mask the padded tail columns (cdiv grid).
    col = jax.lax.broadcasted_iota(jnp.int32, scale.shape, 1) + t * TR
    ld = jnp.sum(jnp.where(col < total_t, jnp.log(scale), 0.0))
    ld_ref[...] = ld.reshape(1, 1, 1, 1)


def flowstep_forward(x, cond, logdet, params, *, t_tile=None, matmul_dtype=None):
    """Normal (non-reverse) FlowStep pass, channels-first (B, C, T) layout.

    Returns (z, cond, logdet).  `matmul_dtype=jnp.bfloat16` casts MXU operands only
    (f32 accumulation, f32 elementwise) — recommended on v6e/v7x."""
    B, C, T = x.shape
    Cc = cond.shape[1]
    C1, C2 = C // 2, C - C // 2
    H = params["w1"].shape[1]
    f32 = jnp.float32

    # Time sits on lanes: use the full sequence when short, otherwise a 128-multiple
    # tile with a cdiv grid + masked tail (no divisor search, any T works).
    max_tile = 1024
    if t_tile is None:
        t_tile = T if T <= max_tile else max_tile
    num_t = pl.cdiv(T, t_tile)

    an_logs = params["an_logs"].reshape(C).astype(f32)
    an_bias = params["an_bias"].reshape(C).astype(f32)
    w_conv = params["w_conv"].astype(f32)

    # --- Fold ActNorm into the 1x1 conv:  conv(W, (x + b) * e^s) == W' x + b' ---
    s = jnp.exp(an_logs)                          # (C,)
    w_t = w_conv.T                                # channels-last math: x @ w_t
    w_fused = s[:, None] * w_t                    # (C, C)
    b_fused = (an_bias * s)[None, :] @ w_t        # (1, C)
    wz = w_fused.T                                # channels-first: z = wz @ x + bz
    bz = b_fused.reshape(C, 1)

    # --- Fold z1's affine map into the first coupling Linear ---
    w1a = params["w1"][:C1].astype(f32)           # (C1, H)
    w1c = params["w1"][C1:].astype(f32)           # (Cc, H)
    wz1 = w_fused[:, :C1]                         # (C, C1)
    bz1 = b_fused[:, :C1]                         # (1, C1)
    w1x_cf = (wz1 @ w1a).T                        # (H, C)
    w1c_cf = w1c.T                                # (H, Cc)
    b1_cf = (bz1 @ w1a + params["b1"].astype(f32)).reshape(H, 1)

    w2_cf = params["w2"].astype(f32).T            # (H, H)
    b2_cf = params["b2"].astype(f32).reshape(H, 1)

    # --- 'cross' split as a row permutation of the zero-init output Linear ---
    w3 = params["w3"].astype(f32)
    b3 = params["b3"].astype(f32)
    w3_cf = jnp.concatenate([w3[:, 0::2], w3[:, 1::2]], axis=1).T     # (2*C2, H)
    b3_cf = jnp.concatenate([b3[:, 0::2], b3[:, 1::2]], axis=1).reshape(2 * C2, 1)

    # --- Constant (data-independent) logdet terms, computed once in the wrapper ---
    _, w_logabsdet = jnp.linalg.slogdet(w_conv)
    const_logdet = T * (jnp.sum(an_logs) + w_logabsdet)

    # Optional bf16 MXU operands (halve DMA bytes, keep f32 accumulation/elementwise).
    if matmul_dtype is not None:
        x_in = x.astype(matmul_dtype)
        cond_in = cond.astype(matmul_dtype)
        wz, w1x_cf, w1c_cf, w2_cf, w3_cf = (
            a.astype(matmul_dtype) for a in (wz, w1x_cf, w1c_cf, w2_cf, w3_cf))
    else:
        x_in, cond_in = x, cond

    kernel = functools.partial(flowstep_kernel, total_t=T)

    z_out, ld_partial = pl.pallas_call(
        kernel,
        out_shape=(
            jax.ShapeDtypeStruct((B, C, T), x.dtype),
            jax.ShapeDtypeStruct((B, num_t, 1, 1), jnp.float32),
        ),
        grid_spec=pltpu.PrefetchScalarGridSpec(
            num_scalar_prefetch=0,
            grid=(B, num_t),
            in_specs=[
                pl.BlockSpec((1, C, t_tile), lambda b, t: (b, 0, t)),    # x
                pl.BlockSpec((1, Cc, t_tile), lambda b, t: (b, 0, t)),   # cond
                pl.BlockSpec((C, C), lambda b, t: (0, 0)),               # wz
                pl.BlockSpec((C, 1), lambda b, t: (0, 0)),               # bz
                pl.BlockSpec((H, C), lambda b, t: (0, 0)),               # w1x
                pl.BlockSpec((H, Cc), lambda b, t: (0, 0)),              # w1c
                pl.BlockSpec((H, 1), lambda b, t: (0, 0)),               # b1
                pl.BlockSpec((H, H), lambda b, t: (0, 0)),               # w2
                pl.BlockSpec((H, 1), lambda b, t: (0, 0)),               # b2
                pl.BlockSpec((2 * C2, H), lambda b, t: (0, 0)),          # w3 (permuted)
                pl.BlockSpec((2 * C2, 1), lambda b, t: (0, 0)),          # b3 (permuted)
            ],
            out_specs=[
                pl.BlockSpec((1, C, t_tile), lambda b, t: (b, 0, t)),    # z
                pl.BlockSpec((1, 1, 1, 1), lambda b, t: (b, t, 0, 0)),   # logdet partials
            ],
        ),
        compiler_params=pltpu.CompilerParams(
            dimension_semantics=("parallel", "parallel"),
            vmem_limit_bytes=32 * 1024 * 1024,
        ),
    )(x_in, cond_in, wz, bz, w1x_cf, w1c_cf, b1_cf, w2_cf, b2_cf, w3_cf, b3_cf)

    logdet_out = (logdet.astype(jnp.float32) + const_logdet
                  + jnp.sum(ld_partial, axis=(1, 2, 3)))
    return z_out, cond, logdet_out


def flowstep_reference(x, cond, logdet, params):
    """Pure-JAX reference of FlowStep.normal_flow, channels-first (B, C, T)."""
    B, C, T = x.shape
    C1 = C // 2

    z = (x + params["an_bias"].reshape(1, C, 1)) * jnp.exp(params["an_logs"].reshape(1, C, 1))
    logdet = logdet + T * jnp.sum(params["an_logs"])

    _, w_logabsdet = jnp.linalg.slogdet(params["w_conv"])
    z = jnp.einsum("ck,bkt->bct", params["w_conv"], z)
    logdet = logdet + T * w_logabsdet

    z1, z2 = z[:, :C1], z[:, C1:]
    zc = jnp.concatenate([z1, cond], axis=1)
    h = jax.nn.relu(jnp.einsum("bit,io->bot", zc, params["w1"]) + params["b1"].reshape(1, -1, 1))
    h = jax.nn.relu(jnp.einsum("bit,io->bot", h, params["w2"]) + params["b2"].reshape(1, -1, 1))
    h = jnp.einsum("bit,io->bot", h, params["w3"]) + params["b3"].reshape(1, -1, 1)

    shift = h[:, 0::2]
    scale = jax.nn.sigmoid(h[:, 1::2] + 2.0) + 1e-6
    z2 = (z2 + shift) * scale
    logdet = logdet + jnp.sum(jnp.log(scale), axis=(1, 2))
    return jnp.concatenate([z1, z2], axis=1), cond, logdet


if __name__ == "__main__":
    key = jax.random.PRNGKey(0)
    B, T = 2, 16
    C = 8       # in_channels
    Cc = 4      # cond_channels
    H = 32      # hidden_channels
    C1, C2 = C // 2, C - C // 2

    ks = jax.random.split(key, 13)
    x = jax.random.normal(ks[0], (B, C, T), jnp.float32)
    cond = jax.random.normal(ks[1], (B, Cc, T), jnp.float32)
    logdet0 = jnp.zeros((B,), jnp.float32)

    params = dict(
        # ActNorm2d params (deterministic synthetic init)
        an_bias=0.1 * jax.random.normal(ks[2], (C,), jnp.float32),
        an_logs=0.1 * jax.random.normal(ks[3], (C,), jnp.float32),
        # InvertibleConv1x1: random orthogonal init (as in Glow)
        w_conv=jnp.linalg.qr(jax.random.normal(ks[4], (C, C), jnp.float32))[0],
        # FF coupling net, weights stored (in, out) so the math is x @ W + b
        w1=jax.random.normal(ks[5], (C1 + Cc, H), jnp.float32) / jnp.sqrt(C1 + Cc),
        b1=0.01 * jax.random.normal(ks[6], (1, H), jnp.float32),
        w2=jax.random.normal(ks[7], (H, H), jnp.float32) / jnp.sqrt(H),
        b2=0.01 * jax.random.normal(ks[8], (1, H), jnp.float32),
        # LinearZeroInit is zeros at init; small random values here so the affine
        # shift/scale path and the 'cross' split are actually exercised.
        w3=0.05 * jax.random.normal(ks[9], (H, 2 * C2), jnp.float32),
        b3=0.05 * jax.random.normal(ks[10], (1, 2 * C2), jnp.float32),
    )

    # f32 path (reference numerics)
    z, cond_out, logdet = jax.jit(flowstep_forward)(x, cond, logdet0, params)
    jax.block_until_ready((z, cond_out, logdet))
    z_ref, _, logdet_ref = flowstep_reference(x, cond, logdet0, params)
    assert jnp.allclose(z, z_ref, atol=1e-3, rtol=1e-3), "z mismatch (f32)"
    assert jnp.allclose(logdet, logdet_ref, atol=1e-3, rtol=1e-3), "logdet mismatch (f32)"

    # Non-divisible sequence length: cdiv grid + masked tail (no divisor search).
    T2 = 200
    x2 = jax.random.normal(ks[11], (B, C, T2), jnp.float32)
    cond2 = jax.random.normal(ks[12], (B, Cc, T2), jnp.float32)
    z2o, _, logdet2 = jax.jit(functools.partial(flowstep_forward, t_tile=128))(
        x2, cond2, logdet0, params)
    jax.block_until_ready((z2o, logdet2))
    z2_ref, _, logdet2_ref = flowstep_reference(x2, cond2, logdet0, params)
    assert jnp.allclose(z2o, z2_ref, atol=1e-3, rtol=1e-3), "z mismatch (tail)"
    assert jnp.allclose(logdet2, logdet2_ref, atol=1e-3, rtol=1e-3), "logdet mismatch (tail)"

    # bf16 MXU-operand path (v6e/v7x recommendation): f32 accumulation, looser check.
    z_bf, _, logdet_bf = jax.jit(
        functools.partial(flowstep_forward, matmul_dtype=jnp.bfloat16))(
        x, cond, logdet0, params)
    jax.block_until_ready((z_bf, logdet_bf))
    assert jnp.allclose(z_bf, z_ref, atol=1e-1, rtol=5e-2), "z mismatch (bf16)"
    assert jnp.allclose(logdet_bf, logdet_ref, atol=5e-1, rtol=5e-2), "logdet mismatch (bf16)"

    print("KERNEL_OK")
</pallas_src>

<mosaic_0001>
module attributes {stable_mosaic.version = 11 : i64} {
  func.func @flowstep_kernel(%arg0: i32, %arg1: i32, %arg2: memref<1x8x16xf32, #tpu.memory_space<vmem>>, %arg3: memref<1x4x16xf32, #tpu.memory_space<vmem>>, %arg4: memref<8x8xf32, #tpu.memory_space<vmem>>, %arg5: memref<8x1xf32, #tpu.memory_space<vmem>>, %arg6: memref<32x8xf32, #tpu.memory_space<vmem>>, %arg7: memref<32x4xf32, #tpu.memory_space<vmem>>, %arg8: memref<32x1xf32, #tpu.memory_space<vmem>>, %arg9: memref<32x32xf32, #tpu.memory_space<vmem>>, %arg10: memref<32x1xf32, #tpu.memory_space<vmem>>, %arg11: memref<8x32xf32, #tpu.memory_space<vmem>>, %arg12: memref<8x1xf32, #tpu.memory_space<vmem>>, %arg13: memref<1x8x16xf32, #tpu.memory_space<vmem>>, %arg14: memref<1x1x1x1xf32, #tpu.memory_space<vmem>>) attributes {dimension_semantics = [#tpu.dimension_semantics<parallel>, #tpu.dimension_semantics<parallel>], iteration_bounds = array<i64: 2, 1>, scalar_prefetch = 0 : i64, scratch_operands = 0 : i64, tpu.core_type = #tpu.core_type<tc>, window_params = [{transform_indices = @transform_0, window_bounds = array<i64: 1, 8, 16>}, {transform_indices = @transform_1, window_bounds = array<i64: 1, 4, 16>}, {pipeline_mode = #tpu.pipeline_mode<synchronous>, transform_indices = @transform_2, window_bounds = array<i64: 8, 8>}, {pipeline_mode = #tpu.pipeline_mode<synchronous>, transform_indices = @transform_3, window_bounds = array<i64: 8, 1>}, {pipeline_mode = #tpu.pipeline_mode<synchronous>, transform_indices = @transform_4, window_bounds = array<i64: 32, 8>}, {pipeline_mode = #tpu.pipeline_mode<synchronous>, transform_indices = @transform_5, window_bounds = array<i64: 32, 4>}, {pipeline_mode = #tpu.pipeline_mode<synchronous>, transform_indices = @transform_6, window_bounds = array<i64: 32, 1>}, {pipeline_mode = #tpu.pipeline_mode<synchronous>, transform_indices = @transform_7, window_bounds = array<i64: 32, 32>}, {pipeline_mode = #tpu.pipeline_mode<synchronous>, transform_indices = @transform_8, window_bounds = array<i64: 32, 1>}, {pipeline_mode = #tpu.pipeline_mode<synchronous>, transform_indices = @transform_9, window_bounds = array<i64: 8, 32>}, {pipeline_mode = #tpu.pipeline_mode<synchronous>, transform_indices = @transform_10, window_bounds = array<i64: 8, 1>}, {transform_indices = @transform_11, window_bounds = array<i64: 1, 8, 16>}, {transform_indices = @transform_12, window_bounds = array<i64: 1, 1, 1, 1>}]} {
    %c0 = arith.constant 0 : index
    %c0_0 = arith.constant 0 : index
    %c0_1 = arith.constant 0 : index
    %0 = vector.load %arg2[%c0, %c0_0, %c0_1] : memref<1x8x16xf32, #tpu.memory_space<vmem>>, vector<1x8x16xf32>
    %1 = vector.shape_cast %0 : vector<1x8x16xf32> to vector<8x16xf32>
    %c0_2 = arith.constant 0 : index
    %c0_3 = arith.constant 0 : index
    %c0_4 = arith.constant 0 : index
    %2 = vector.load %arg3[%c0_2, %c0_3, %c0_4] : memref<1x4x16xf32, #tpu.memory_space<vmem>>, vector<1x4x16xf32>
    %3 = vector.shape_cast %2 : vector<1x4x16xf32> to vector<4x16xf32>
    %c0_5 = arith.constant 0 : index
    %c0_6 = arith.constant 0 : index
    %4 = vector.load %arg4[%c0_5, %c0_6] : memref<8x8xf32, #tpu.memory_space<vmem>>, vector<8x8xf32>
    %cst = arith.constant dense<0.000000e+00> : vector<8x16xf32>
    %5 = tpu.matmul %4, %1, %cst {dimension_numbers = #tpu.dot_dimension_numbers<[1], [0], [0], [1], [0, 0, 1, 1], [], []>} : vector<8x8xf32>, vector<8x16xf32>, vector<8x16xf32> -> vector<8x16xf32>
    %c0_7 = arith.constant 0 : index
    %c0_8 = arith.constant 0 : index
    %6 = vector.load %arg5[%c0_7, %c0_8] : memref<8x1xf32, #tpu.memory_space<vmem>>, vector<8x1xf32>
    %7 = vector.broadcast %6 : vector<8x1xf32> to vector<8x16xf32>
    %8 = arith.addf %5, %7 : vector<8x16xf32>
    %c0_9 = arith.constant 0 : index
    %c0_10 = arith.constant 0 : index
    %9 = vector.load %arg6[%c0_9, %c0_10] : memref<32x8xf32, #tpu.memory_space<vmem>>, vector<32x8xf32>
    %cst_11 = arith.constant dense<0.000000e+00> : vector<32x16xf32>
    %10 = tpu.matmul %9, %1, %cst_11 {dimension_numbers = #tpu.dot_dimension_numbers<[1], [0], [0], [1], [0, 0, 1, 1], [], []>} : vector<32x8xf32>, vector<8x16xf32>, vector<32x16xf32> -> vector<32x16xf32>
    %c0_12 = arith.constant 0 : index
    %c0_13 = arith.constant 0 : index
    %11 = vector.load %arg7[%c0_12, %c0_13] : memref<32x4xf32, #tpu.memory_space<vmem>>, vector<32x4xf32>
    %cst_14 = arith.constant dense<0.000000e+00> : vector<32x16xf32>
    %12 = tpu.matmul %11, %3, %cst_14 {dimension_numbers = #tpu.dot_dimension_numbers<[1], [0], [0], [1], [0, 0, 1, 1], [], []>} : vector<32x4xf32>, vector<4x16xf32>, vector<32x16xf32> -> vector<32x16xf32>
    %13 = arith.addf %10, %12 : vector<32x16xf32>
    %c0_15 = arith.constant 0 : index
    %c0_16 = arith.constant 0 : index
    %14 = vector.load %arg8[%c0_15, %c0_16] : memref<32x1xf32, #tpu.memory_space<vmem>>, vector<32x1xf32>
    %15 = vector.broadcast %14 : vector<32x1xf32> to vector<32x16xf32>
    %16 = arith.addf %13, %15 : vector<32x16xf32>
    %cst_17 = arith.constant 0.000000e+00 : f32
    %17 = vector.broadcast %cst_17 : f32 to vector<32x16xf32>
    %18 = arith.maximumf %16, %17 : vector<32x16xf32>
    %c0_18 = arith.constant 0 : index
    %c0_19 = arith.constant 0 : index
    %19 = vector.load %arg9[%c0_18, %c0_19] : memref<32x32xf32, #tpu.memory_space<vmem>>, vector<32x32xf32>
    %cst_20 = arith.constant dense<0.000000e+00> : vector<32x16xf32>
    %20 = tpu.matmul %19, %18, %cst_20 {dimension_numbers = #tpu.dot_dimension_numbers<[1], [0], [0], [1], [0, 0, 1, 1], [], []>} : vector<32x32xf32>, vector<32x16xf32>, vector<32x16xf32> -> vector<32x16xf32>
    %c0_21 = arith.constant 0 : index
    %c0_22 = arith.constant 0 : index
    %21 = vector.load %arg10[%c0_21, %c0_22] : memref<32x1xf32, #tpu.memory_space<vmem>>, vector<32x1xf32>
    %22 = vector.broadcast %21 : vector<32x1xf32> to vector<32x16xf32>
    %23 = arith.addf %20, %22 : vector<32x16xf32>
    %cst_23 = arith.constant 0.000000e+00 : f32
    %24 = vector.broadcast %cst_23 : f32 to vector<32x16xf32>
    %25 = arith.maximumf %23, %24 : vector<32x16xf32>
    %c0_24 = arith.constant 0 : index
    %c0_25 = arith.constant 0 : index
    %26 = vector.load %arg11[%c0_24, %c0_25] : memref<8x32xf32, #tpu.memory_space<vmem>>, vector<8x32xf32>
    %cst_26 = arith.constant dense<0.000000e+00> : vector<8x16xf32>
    %27 = tpu.matmul %26, %25, %cst_26 {dimension_numbers = #tpu.dot_dimension_numbers<[1], [0], [0], [1], [0, 0, 1, 1], [], []>} : vector<8x32xf32>, vector<32x16xf32>, vector<8x16xf32> -> vector<8x16xf32>
    %c0_27 = arith.constant 0 : index
    %c0_28 = arith.constant 0 : index
    %28 = vector.load %arg12[%c0_27, %c0_28] : memref<8x1xf32, #tpu.memory_space<vmem>>, vector<8x1xf32>
    %29 = vector.broadcast %28 : vector<8x1xf32> to vector<8x16xf32>
    %30 = arith.addf %27, %29 : vector<8x16xf32>
    %31 = vector.extract_strided_slice %30 {offsets = [0, 0], sizes = [4, 16], strides = [1, 1]} : vector<8x16xf32> to vector<4x16xf32>
    %32 = vector.extract_strided_slice %30 {offsets = [4, 0], sizes = [4, 16], strides = [1, 1]} : vector<8x16xf32> to vector<4x16xf32>
    %cst_29 = arith.constant 2.000000e+00 : f32
    %33 = vector.broadcast %cst_29 : f32 to vector<4x16xf32>
    %34 = arith.addf %32, %33 : vector<4x16xf32>
    %cst_30 = arith.constant 5.000000e-01 : f32
    %35 = vector.broadcast %cst_30 : f32 to vector<4x16xf32>
    %36 = arith.mulf %35, %34 : vector<4x16xf32>
    %37 = math.tanh %36 : vector<4x16xf32>
    %cst_31 = arith.constant 1.000000e+00 : f32
    %38 = vector.broadcast %cst_31 : f32 to vector<4x16xf32>
    %39 = arith.addf %37, %38 : vector<4x16xf32>
    %cst_32 = arith.constant 5.000000e-01 : f32
    %40 = vector.broadcast %cst_32 : f32 to vector<4x16xf32>
    %41 = arith.mulf %40, %39 : vector<4x16xf32>
    %cst_33 = arith.constant 9.99999997E-7 : f32
    %42 = vector.broadcast %cst_33 : f32 to vector<4x16xf32>
    %43 = arith.addf %41, %42 : vector<4x16xf32>
    %44 = vector.extract_strided_slice %8 {offsets = [4, 0], sizes = [4, 16], strides = [1, 1]} : vector<8x16xf32> to vector<4x16xf32>
    %45 = arith.addf %44, %31 : vector<4x16xf32>
    %46 = arith.mulf %45, %43 : vector<4x16xf32>
    %47 = vector.extract_strided_slice %8 {offsets = [0, 0], sizes = [4, 16], strides = [1, 1]} : vector<8x16xf32> to vector<4x16xf32>
    %48 = tpu.concatenate %47, %46 in 0 : vector<4x16xf32>, vector<4x16xf32> -> vector<8x16xf32>
    %c0_34 = arith.constant 0 : index
    %c0_35 = arith.constant 0 : index
    %c0_36 = arith.constant 0 : index
    %49 = vector.load %arg13[%c0_34, %c0_35, %c0_36] : memref<1x8x16xf32, #tpu.memory_space<vmem>>, vector<1x8x16xf32>
    %50 = vector.shape_cast %49 : vector<1x8x16xf32> to vector<8x16xf32>
    %51 = vector.shape_cast %48 : vector<8x16xf32> to vector<1x8x16xf32>
    tpu.vector_store %arg13[%c0_34, %c0_35, %c0_36], %51 {strides = array<i32>} : memref<1x8x16xf32, #tpu.memory_space<vmem>>, vector<1x8x16xf32>,
    %52 = tpu.iota {dimensions = array<i32: 1>} : vector<4x16xi32>
    %c16_i32 = arith.constant 16 : i32
    %53 = arith.muli %arg1, %c16_i32 : i32
    %54 = vector.broadcast %53 : i32 to vector<4x16xi32>
    %55 = arith.addi %52, %54 : vector<4x16xi32>
    %c16_i32_37 = arith.constant 16 : i32
    %56 = vector.broadcast %c16_i32_37 : i32 to vector<4x16xi32>
    %57 = arith.cmpi slt, %55, %56 : vector<4x16xi32>
    %58 = math.log %43 : vector<4x16xf32>
    %cst_38 = arith.constant 0.000000e+00 : f32
    %59 = vector.broadcast %cst_38 : f32 to vector<4x16xf32>
    %60 = arith.select %57, %58, %59 : vector<4x16xi1>, vector<4x16xf32>
    %61 = vector.shape_cast %60 : vector<4x16xf32> to vector<1x4x16xf32>
    %cst_39 = arith.constant dense<0.000000e+00> : vector<1xf32>
    %62 = vector.multi_reduction <add>, %61, %cst_39 [1, 2] : vector<1x4x16xf32> to vector<1xf32>
    %63 = vector.shape_cast %62 : vector<1xf32> to vector<1x1x1xf32>
    %64 = vector.extract %63[0, 0, 0] : f32 from vector<1x1x1xf32>
    %65 = vector.broadcast %64 : f32 to vector<1x1x1x1xf32>
    %c0_40 = arith.constant 0 : index
    %c0_41 = arith.constant 0 : index
    %c0_42 = arith.constant 0 : index
    %c0_43 = arith.constant 0 : index
    %66 = vector.load %arg14[%c0_40, %c0_41, %c0_42, %c0_43] : memref<1x1x1x1xf32, #tpu.memory_space<vmem>>, vector<1x1x1x1xf32>
    tpu.vector_store %arg14[%c0_40, %c0_41, %c0_42, %c0_43], %65 {strides = array<i32>} : memref<1x1x1x1xf32, #tpu.memory_space<vmem>>, vector<1x1x1x1xf32>,
    return
  }
  func.func @transform_0(%arg0: i32, %arg1: i32) -> (i32, i32, i32) {
    %c0_i32 = arith.constant 0 : i32
    %c0_i32_0 = arith.constant 0 : i32
    return %arg0, %c0_i32, %arg1 : i32, i32, i32
  }
  func.func @transform_1(%arg0: i32, %arg1: i32) -> (i32, i32, i32) {
    %c0_i32 = arith.constant 0 : i32
    %c0_i32_0 = arith.constant 0 : i32
    return %arg0, %c0_i32, %arg1 : i32, i32, i32
  }
  func.func @transform_2(%arg0: i32, %arg1: i32) -> (i32, i32) {
    %c0_i32 = arith.constant 0 : i32
    %c0_i32_0 = arith.constant 0 : i32
    %c0_i32_1 = arith.constant 0 : i32
    return %c0_i32, %c0_i32_0 : i32, i32
  }
  func.func @transform_3(%arg0: i32, %arg1: i32) -> (i32, i32) {
    %c0_i32 = arith.constant 0 : i32
    %c0_i32_0 = arith.constant 0 : i32
    %c0_i32_1 = arith.constant 0 : i32
    return %c0_i32, %c0_i32_0 : i32, i32
  }
  func.func @transform_4(%arg0: i32, %arg1: i32) -> (i32, i32) {
    %c0_i32 = arith.constant 0 : i32
    %c0_i32_0 = arith.constant 0 : i32
    %c0_i32_1 = arith.constant 0 : i32
    return %c0_i32, %c0_i32_0 : i32, i32
  }
  func.func @transform_5(%arg0: i32, %arg1: i32) -> (i32, i32) {
    %c0_i32 = arith.constant 0 : i32
    %c0_i32_0 = arith.constant 0 : i32
    %c0_i32_1 = arith.constant 0 : i32
    return %c0_i32, %c0_i32_0 : i32, i32
  }
  func.func @transform_6(%arg0: i32, %arg1: i32) -> (i32, i32) {
    %c0_i32 = arith.constant 0 : i32
    %c0_i32_0 = arith.constant 0 : i32
    %c0_i32_1 = arith.constant 0 : i32
    return %c0_i32, %c0_i32_0 : i32, i32
  }
  func.func @transform_7(%arg0: i32, %arg1: i32) -> (i32, i32) {
    %c0_i32 = arith.constant 0 : i32
    %c0_i32_0 = arith.constant 0 : i32
    %c0_i32_1 = arith.constant 0 : i32
    return %c0_i32, %c0_i32_0 : i32, i32
  }
  func.func @transform_8(%arg0: i32, %arg1: i32) -> (i32, i32) {
    %c0_i32 = arith.constant 0 : i32
    %c0_i32_0 = arith.constant 0 : i32
    %c0_i32_1 = arith.constant 0 : i32
    return %c0_i32, %c0_i32_0 : i32, i32
  }
  func.func @transform_9(%arg0: i32, %arg1: i32) -> (i32, i32) {
    %c0_i32 = arith.constant 0 : i32
    %c0_i32_0 = arith.constant 0 : i32
    %c0_i32_1 = arith.constant 0 : i32
    return %c0_i32, %c0_i32_0 : i32, i32
  }
  func.func @transform_10(%arg0: i32, %arg1: i32) -> (i32, i32) {
    %c0_i32 = arith.constant 0 : i32
    %c0_i32_0 = arith.constant 0 : i32
    %c0_i32_1 = arith.constant 0 : i32
    return %c0_i32, %c0_i32_0 : i32, i32
  }
  func.func @transform_11(%arg0: i32, %arg1: i32) -> (i32, i32, i32) {
    %c0_i32 = arith.constant 0 : i32
    %c0_i32_0 = arith.constant 0 : i32
    return %arg0, %c0_i32, %arg1 : i32, i32, i32
  }
  func.func @transform_12(%arg0: i32, %arg1: i32) -> (i32, i32, i32, i32) {
    %c0_i32 = arith.constant 0 : i32
    %c0_i32_0 = arith.constant 0 : i32
    %c0_i32_1 = arith.constant 0 : i32
    return %arg0, %arg1, %c0_i32, %c0_i32_0 : i32, i32, i32, i32
  }
}

</mosaic_0001>

<llo_original>
// kernel: custom-call.2
$region0: #{custom-call.2}
  %s0 = inlined_call_operand.vmem [shape: f32[8,8], index: 0, kind: input, shape index: {}]
  %s1 = inlined_call_operand.vmem [shape: f32[8,8], index: 1, kind: output, shape index: {0}]
  %s2 = inlined_call_operand.hbm [shape: s32[8], index: 2, kind: output, shape index: {1}]
  %s3 = inlined_call_operand.hbm [shape: s32[8], index: 3, kind: output, shape index: {2}]
  %4 = xla_tuple %s1, %s2, %s3
  $region1: #{custom-call.2} parent=0
    #allocation0 [shape = 'u8[4096]{0}', space=vmem, size = 0x1000, scoped, tag = 'operand span for operand 0']
    #allocation1 [shape = 'u8[4096]{0}', space=vmem, size = 0x1000, scoped, tag = 'operand span for operand 1']
    #allocation2 [shape = 'u8[4096]{0}', space=vmem, size = 0x1000, scoped, tag = 'operand span for operand 2']
    #allocation3 [shape = 'u8[512]{0}', space=vmem, size = 0x400, scoped, tag = 'packed  for operand 2']
    #allocation4 [shape = 's32[1]{0}', space=sflag, size = 0x4, scoped, tag = 'scoped memory for custom-call.2']
    #allocation5 [shape = 'u8[4096]{0}', space=vmem, size = 0x1000, scoped, tag = 'operand span for operand 3']
    #allocation6 [shape = 'u8[512]{0}', space=vmem, size = 0x400, scoped, tag = 'packed  for operand 3']
    #allocation7 [shape = 's32[1]{0}', space=sflag, size = 0x4, scoped, tag = 'scoped memory for custom-call.2']
    #allocation8 [shape = 's32[8,128]{1,0}', space=vmem, size = 0x1000, scoped, tag = 'scratch for permutations']
    %5 = vsyncpa [#allocation4], 0
    %6 = vsyncpa [#allocation7], 0
    %p8 = scmp.gt.s32.totalorder 8, 0
    // Predicated region
    $region2: #{custom-call.2} parent=1 // pred_check
      %p9 = pneg %p8
    $region3: #{custom-call.2} parent=1 // pred_check_branch
      %11 = sbr.rel (%p9) target = $region5
    $region4: #{custom-call.2} parent=1 // pred_region
      %s12 = sshra.s32 8, 3
      %p13 = scmp.gt.s32.totalorder %s12, 0
      // Predicated region
      $region6: #{custom-call.2} parent=4 // pred_check
        %p14 = pneg %p13
      $region7: #{custom-call.2} parent=4 // pred_check_branch
        %16 = sbr.rel (%p14) target = $region9
      $region8: #{custom-call.2} parent=4 // pred_region
        %s17 = ssub.s32 %s12, 1
        %s18 = smul.u32 %s17, 128
        %s19 = sshra.s32 %s18, 4
        %s20 = scalar_lea.vmem %s0, %s19
        %v21 = vld [vmem:[%s0] sm:$0xff]
        // While loop
        $region10: #{custom-call.2} parent=8 // loop_pre_header
          _
        $region11: #{custom-call.2} parent=8 // loop_header
          %s22 = sphi %s0, %s44
          %s23 = sphi [#allocation0], %s45
          %v24 = vphi %v21, %v46
          %s25 = ssub.s32 %s20, 64
          %p26 = scmp.gt.s32.totalorder %s22, %s25
        $region12: #{custom-call.2} parent=8 // loop_header_branch
          %28 = sbr.rel (%p26) target = $region16
        $region13: #{custom-call.2} parent=8 // loop_body
          %29 = vst [vmem:[%s23] sm:$0xff] %v24
          %v30 = vld [vmem:[%s22 + $0x8] sm:$0xff]
          %31 = vst [vmem:[%s23 + $0x8] sm:$0xff] %v30
          %v32 = vld [vmem:[%s22 + $0x10] sm:$0xff]
          %33 = vst [vmem:[%s23 + $0x10] sm:$0xff] %v32
          %v34 = vld [vmem:[%s22 + $0x18] sm:$0xff]
          %35 = vst [vmem:[%s23 + $0x18] sm:$0xff] %v34
          %v36 = vld [vmem:[%s22 + $0x20] sm:$0xff]
          %37 = vst [vmem:[%s23 + $0x20] sm:$0xff] %v36
          %v38 = vld [vmem:[%s22 + $0x28] sm:$0xff]
          %39 = vst [vmem:[%s23 + $0x28] sm:$0xff] %v38
          %v40 = vld [vmem:[%s22 + $0x30] sm:$0xff]
          %41 = vst [vmem:[%s23 + $0x30] sm:$0xff] %v40
          %v42 = vld [vmem:[%s22 + $0x38] sm:$0xff]
          %43 = vst [vmem:[%s23 + $0x38] sm:$0xff] %v42
        $region14: #{custom-call.2} parent=8 // loop_footer
          %s44 = scalar_lea.vmem %s22, 64
          %s45 = scalar_lea.vmem %s23, 64
          %v46 = vld [vmem:[%s22 + $0x40] sm:$0xff]
        $region15: #{custom-call.2} parent=8 // loop_footer_branch
          %47 = sbr.rel target = $region11
        $region16: #{custom-call.2} parent=8 // loop_exit
          _
        // While loop
        $region17: #{custom-call.2} parent=8 // loop_pre_header
          _
        $region18: #{custom-call.2} parent=8 // loop_header
          %s48 = sphi %s22, %s56
          %s49 = sphi %s23, %s57
          %v50 = vphi %v24, %v50
          %p51 = scmp.gt.s32.totalorder %s48, %s20
        $region19: #{custom-call.2} parent=8 // loop_header_branch
          %53 = sbr.rel (%p51) target = $region23
        $region20: #{custom-call.2} parent=8 // loop_body
          %v54 = vld [vmem:[%s48] sm:$0xff]
          %55 = vst [vmem:[%s49] sm:$0xff] %v54
        $region21: #{custom-call.2} parent=8 // loop_footer
          %s56 = scalar_lea.vmem %s48, 8
          %s57 = scalar_lea.vmem %s49, 8
        $region22: #{custom-call.2} parent=8 // loop_footer_branch
          %58 = sbr.rel target = $region18
        $region23: #{custom-call.2} parent=8 // loop_exit
          _
      $region9: #{custom-call.2} parent=4 // pred_fallthru
        _
      %s59 = sand.u32 8, 7
      %s60 = sshll.u32 1, %s59
      %s61 = ssub.s32 %s60, 1
      %s62 = smul.u32 %s12, 128
      %s63 = sshra.s32 %s62, 4
      %s64 = scalar_lea.vmem [#allocation0], %s63
      %s65 = smul.u32 %s12, 128
      %s66 = sshra.s32 %s65, 4
      %s67 = scalar_lea.vmem %s0, %s66
      %v68 = vld [vmem:[%s67] sm:%s61]
      %69 = vst [vmem:[%s64] sm:%s61] %v68
    $region5: #{custom-call.2} parent=1 // pred_fallthru
      _
    %v70 = vld [vmem:[#allocation0] sm:$0xff]
    %71 = vst [vmem:[#allocation1] sm:$0xff] %v70
    %72 = vst [vmem:[#allocation2] sm:$0x1] 0
    %v73 = vlaneseq
    %v74 = vshrl.u32 %v73, 7
    %v75 = vmov %v74
    %77 = vst [vmem:[#allocation8] sm:$0xff] %v75
    loop: start=0, step=1, limit=8
    $region25: #{custom-call.2} parent=1 // loop_pre_header
      _
    $region26: #{custom-call.2} parent=1 // loop_header
      %s79 = sphi 0, %s83
      %p80 = scmp.ge.s32.totalorder %s79, 8
    $region27: #{custom-call.2} parent=1 // loop_header_branch
      %82 = sbr.rel (%p80) target = $region31
    $region28: #{custom-call.2} parent=1 // loop_body
      %v84 = vstv %s79
      %v85 = vlaneseq
      %v86 = vshrl.u32 %v85, 7
      %v87 = vmov %v86
      %v88 = vld [vmem:[#allocation1] sm:$0xff]
      %v89 = vand.u32 2147483647, %v88
      %v91 = vstv %s79
      %vm92 = vcmp.ge.s32.totalorder %v87, %v91
      %vm93 = vcmp.lt.s32.totalorder %v87, 8
      %vm94 = vmand %vm92, %vm93
      %vm95 = vcmp.lt.f32.partialorder -inf, %v89
      %vm96 = vmand %vm94, %vm95
      %v97 = vsel %vm96, %v87, %v84
      %v98 = vsel %vm96, %v89, -inf
      %v99 = vrot.slane %v98, 1
      %v100 = vrot.slane %v97, 1
      %vm101 = vcmp.ge.f32.partialorder %v99, %v98
      %v102 = vsel %vm101, %v99, %v98
      %v103 = vsel %vm101, %v100, %v97
      %v104 = vrot.slane %v99, 1
      %v105 = vrot.slane %v100, 1
      %vm106 = vcmp.ge.f32.partialorder %v104, %v102
      %v107 = vsel %vm106, %v104, %v102
      %v108 = vsel %vm106, %v105, %v103
      %v109 = vrot.slane %v104, 1
      %v110 = vrot.slane %v105, 1
      %vm111 = vcmp.ge.f32.partialorder %v109, %v107
      %v112 = vsel %vm111, %v109, %v107
      %v113 = vsel %vm111, %v110, %v108
      %v114 = vrot.slane %v109, 1
      %v115 = vrot.slane %v110, 1
      %vm116 = vcmp.ge.f32.partialorder %v114, %v112
      %v117 = vsel %vm116, %v114, %v112
      %v118 = vsel %vm116, %v115, %v113
      %v119 = vrot.slane %v114, 1
      %v120 = vrot.slane %v115, 1
      %vm121 = vcmp.ge.f32.partialorder %v119, %v117
      %v122 = vsel %vm121, %v119, %v117
      %v123 = vsel %vm121, %v120, %v118
      %v124 = vrot.slane %v119, 1
      %v125 = vrot.slane %v120, 1
      %vm126 = vcmp.ge.f32.partialorder %v124, %v122
      %v127 = vsel %vm126, %v124, %v122
      %v128 = vsel %vm126, %v125, %v123
      %v129 = vrot.slane %v124, 1
      %v130 = vrot.slane %v125, 1
      %vm131 = vcmp.ge.f32.partialorder %v129, %v127
      %v132 = vsel %vm131, %v129, %v127
      %v133 = vsel %vm131, %v130, %v128
      %s134 = ssub.s32 128, %s79
      %135 = vrot.lane.b32.xlu0 %v133, %s134
      %v136 = vpop.permute.xlu0 %135
      %s137 = vtos %v136
      %v138 = vstv %s79
      %v139 = vlaneseq
      %v140 = vand.u32 %v139, 127
      %vm141 = vcmp.eq.s32.totalorder %v140, %v138
      %v142 = vstv %s137
      %v143 = vld [vmem:[#allocation2] ss:$0 sm:$0xff]
      %v144 = vsel %vm141, %v142, %v143
      %145 = vst [vmem:[#allocation2] sm:$0x1] %v144
      %s146 = scalar_lea.vmem [#allocation1], %s79
      %s147 = scalar_lea.vmem [#allocation1], %s137
      %v148 = vld [vmem:[%s146] ss:$0 sm:$0xff]
      %v149 = vld [vmem:[%s147] ss:$0 sm:$0xff]
      %150 = vst [vmem:[%s147] sm:$0x1] %v148
      %151 = vst [vmem:[%s146] sm:$0x1] %v149
      %s152 = scalar_lea.vmem [#allocation8], %s79
      %s153 = scalar_lea.vmem [#allocation8], %s137
      %v154 = vld [vmem:[%s152] ss:$0 sm:$0xff]
      %v155 = vld [vmem:[%s153] ss:$0 sm:$0xff]
      %156 = vst [vmem:[%s153] sm:$0x1] %v154
      %157 = vst [vmem:[%s152] sm:$0x1] %v155
      %vm158 = vcmp.ne.f32.partialorder %v149, 0.0
      %vm159 = vmand %vm141, %vm158
      %v160 = vsel %vm159, %v149, 1.0
      %v161 = vlaneseq
      %v162 = vand.u32 %v161, 127
      %v163 = vstv %s79
      %vm164 = vcmp.gt.s32.totalorder %v162, %v163
      %v165 = vsel %vm164, %v149, 0.0
      %v166 = vlaneseq
      %v167 = vshrl.u32 %v166, 7
      %v168 = vmov %v167
      %v169 = vld [vmem:[#allocation1] sm:$0xff]
      %v171 = vstv %s79
      %vm172 = vcmp.gt.s32.totalorder %v168, %v171
      %v173 = vsel %vm172, %v160, 1.0
      %v174 = vrcp.pop %v173
      %v175 = vmul.f32 %v169, %v174
      %vm176 = vmand %vm172, %vm141
      %v177 = vsel %vm176, %v175, 0.0
      %178 = vadd.xlane.f32.xlu0 %v177
      %v179 = vpop.xlane.xlu0 %178
      %v180 = vmul.f32 %v179, %v165
      %v181 = vsub.f32 %v175, %v180
      %182 = vst [vmem:[#allocation1] sm:$0xff] %v181
    $region29: #{custom-call.2} parent=1 // loop_footer
      %s83 = sadd.s32 1, %s79
    $region30: #{custom-call.2} parent=1 // loop_footer_branch
      %78 = sbr.rel target = $region26
    $region31: #{custom-call.2} parent=1 // loop_exit
      _
    %v183 = vld [vmem:[#allocation8] sm:$0xff]
    %s184 = scalar_lea.vmem [#allocation8], 8
    %s185 = scalar_lea.vmem [#allocation8], 16
    %s186 = scalar_lea.vmem [#allocation8], 24
    %s187 = scalar_lea.vmem [#allocation8], 32
    %s188 = scalar_lea.vmem [#allocation8], 40
    %s189 = scalar_lea.vmem [#allocation8], 48
    %s190 = scalar_lea.vmem [#allocation8], 56
    %s191 = scalar_lea.vmem [#allocation8], 64
    %s192 = scalar_lea.vmem [#allocation8], 72
    %s193 = scalar_lea.vmem [#allocation8], 80
    %s194 = scalar_lea.vmem [#allocation8], 88
    %s195 = scalar_lea.vmem [#allocation8], 96
    %s196 = scalar_lea.vmem [#allocation8], 104
    %s197 = scalar_lea.vmem [#allocation8], 112
    %s198 = scalar_lea.vmem [#allocation8], 120
    %199 = vxpose.xlu0.b32.start [1/16] %v183, 128
    %200 = vxpose.xlu0.b32.cont [2/16] 0, 128
    %201 = vxpose.xlu0.b32.cont [3/16] 0, 128
    %202 = vxpose.xlu0.b32.cont [4/16] 0, 128
    %203 = vxpose.xlu0.b32.cont [5/16] 0, 128
    %204 = vxpose.xlu0.b32.cont [6/16] 0, 128
    %205 = vxpose.xlu0.b32.cont [7/16] 0, 128
    %206 = vxpose.xlu0.b32.cont [8/16] 0, 128
    %207 = vxpose.xlu0.b32.cont [9/16] 0, 128
    %208 = vxpose.xlu0.b32.cont [10/16] 0, 128
    %209 = vxpose.xlu0.b32.cont [11/16] 0, 128
    %210 = vxpose.xlu0.b32.cont [12/16] 0, 128
    %211 = vxpose.xlu0.b32.cont [13/16] 0, 128
    %212 = vxpose.xlu0.b32.cont [14/16] 0, 128
    %213 = vxpose.xlu0.b32.cont [15/16] 0, 128
    %214 = vxpose.xlu0.b32.end [16/16] 0, 128
    %v215 = vpop.trf.xlu0
    %v216 = vpop.trf.xlu0
    %v217 = vpop.trf.xlu0
    %v218 = vpop.trf.xlu0
    %v219 = vpop.trf.xlu0
    %v220 = vpop.trf.xlu0
    %v221 = vpop.trf.xlu0
    %v222 = vpop.trf.xlu0
    %v223 = vpop.trf.xlu0
    %v224 = vpop.trf.xlu0
    %v225 = vpop.trf.xlu0
    %v226 = vpop.trf.xlu0
    %v227 = vpop.trf.xlu0
    %v228 = vpop.trf.xlu0
    %v229 = vpop.trf.xlu0
    %v230 = vpop.trf.xlu0
    %231 = vst [vmem:[#allocation5] sm:$0x1] %v215
    %s233 = sshll.u32 1, 1
    %s234 = ssub.s32 %s233, 1
    %v236 = vld [vmem:[#allocation2] sm:%s234]
    %s237 = sshll.u32 1, 1
    %s238 = ssub.s32 %s237, 1
    %239 = vst [vmem:[#allocation3] sm:%s238] %v236
    %s241 = sshll.u32 1, 1
    %s242 = ssub.s32 %s241, 1
    %v244 = vld [vmem:[#allocation5] sm:%s242]
    %s245 = sshll.u32 1, 1
    %s246 = ssub.s32 %s245, 1
    %247 = vst [vmem:[#allocation6] sm:%s246] %v244
    %p249 = scmp.gt.s32.totalorder 8, 0
    // Predicated region
    $region32: #{custom-call.2} parent=1 // pred_check
      %p250 = pneg %p249
    $region33: #{custom-call.2} parent=1 // pred_check_branch
      %252 = sbr.rel (%p250) target = $region35
    $region34: #{custom-call.2} parent=1 // pred_region
      %s253 = sshra.s32 8, 3
      %p254 = scmp.gt.s32.totalorder %s253, 0
      // Predicated region
      $region36: #{custom-call.2} parent=34 // pred_check
        %p255 = pneg %p254
      $region37: #{custom-call.2} parent=34 // pred_check_branch
        %257 = sbr.rel (%p255) target = $region39
      $region38: #{custom-call.2} parent=34 // pred_region
        %s258 = ssub.s32 %s253, 1
        %s259 = smul.u32 %s258, 128
        %s260 = sshra.s32 %s259, 4
        %s261 = scalar_lea.vmem [#allocation1], %s260
        %v262 = vld [vmem:[#allocation1] sm:$0xff]
        // While loop
        $region40: #{custom-call.2} parent=38 // loop_pre_header
          _
        $region41: #{custom-call.2} parent=38 // loop_header
          %s263 = sphi [#allocation1], %s285
          %s264 = sphi %s1, %s286
          %v265 = vphi %v262, %v287
          %s266 = ssub.s32 %s261, 64
          %p267 = scmp.gt.s32.totalorder %s263, %s266
        $region42: #{custom-call.2} parent=38 // loop_header_branch
          %269 = sbr.rel (%p267) target = $region46
        $region43: #{custom-call.2} parent=38 // loop_body
          %270 = vst [vmem:[%s264] sm:$0xff] %v265
          %v271 = vld [vmem:[%s263 + $0x8] sm:$0xff]
          %272 = vst [vmem:[%s264 + $0x8] sm:$0xff] %v271
          %v273 = vld [vmem:[%s263 + $0x10] sm:$0xff]
          %274 = vst [vmem:[%s264 + $0x10] sm:$0xff] %v273
          %v275 = vld [vmem:[%s263 + $0x18] sm:$0xff]
          %276 = vst [vmem:[%s264 + $0x18] sm:$0xff] %v275
          %v277 = vld [vmem:[%s263 + $0x20] sm:$0xff]
          %278 = vst [vmem:[%s264 + $0x20] sm:$0xff] %v277
          %v279 = vld [vmem:[%s263 + $0x28] sm:$0xff]
          %280 = vst [vmem:[%s264 + $0x28] sm:$0xff] %v279
          %v281 = vld [vmem:[%s263 + $0x30] sm:$0xff]
          %282 = vst [vmem:[%s264 + $0x30] sm:$0xff] %v281
          %v283 = vld [vmem:[%s263 + $0x38] sm:$0xff]
          %284 = vst [vmem:[%s264 + $0x38] sm:$0xff] %v283
        $region44: #{custom-call.2} parent=38 // loop_footer
          %s285 = scalar_lea.vmem %s263, 64
          %s286 = scalar_lea.vmem %s264, 64
          %v287 = vld [vmem:[%s263 + $0x40] sm:$0xff]
        $region45: #{custom-call.2} parent=38 // loop_footer_branch
          %288 = sbr.rel target = $region41
        $region46: #{custom-call.2} parent=38 // loop_exit
          _
        // While loop
        $region47: #{custom-call.2} parent=38 // loop_pre_header
          _
        $region48: #{custom-call.2} parent=38 // loop_header
          %s289 = sphi %s263, %s297
          %s290 = sphi %s264, %s298
          %v291 = vphi %v265, %v291
          %p292 = scmp.gt.s32.totalorder %s289, %s261
        $region49: #{custom-call.2} parent=38 // loop_header_branch
          %294 = sbr.rel (%p292) target = $region53
        $region50: #{custom-call.2} parent=38 // loop_body
          %v295 = vld [vmem:[%s289] sm:$0xff]
          %296 = vst [vmem:[%s290] sm:$0xff] %v295
        $region51: #{custom-call.2} parent=38 // loop_footer
          %s297 = scalar_lea.vmem %s289, 8
          %s298 = scalar_lea.vmem %s290, 8
        $region52: #{custom-call.2} parent=38 // loop_footer_branch
          %299 = sbr.rel target = $region48
        $region53: #{custom-call.2} parent=38 // loop_exit
          _
      $region39: #{custom-call.2} parent=34 // pred_fallthru
        _
      %s300 = sand.u32 8, 7
      %s301 = sshll.u32 1, %s300
      %s302 = ssub.s32 %s301, 1
      %s303 = smul.u32 %s253, 128
      %s304 = sshra.s32 %s303, 4
      %s305 = scalar_lea.vmem %s1, %s304
      %s306 = smul.u32 %s253, 128
      %s307 = sshra.s32 %s306, 4
      %s308 = scalar_lea.vmem [#allocation1], %s307
      %v309 = vld [vmem:[%s308] sm:%s302]
      %310 = vst [vmem:[%s305] sm:%s302] %v309
    $region35: #{custom-call.2} parent=1 // pred_fallthru
      _
    // Predicated region
    $region54: #{custom-call.2} parent=1 // pred_check
      _
    $region55: #{custom-call.2} parent=1 // pred_check_branch
      %312 = sbr.rel (0) target = $region57
    $region56: #{custom-call.2} parent=1 // pred_region
      %s314 = ssub.s32 16, 16
      %315 = vsyncadd [#allocation4], %s314
      %s316 = sshll.u32 [#allocation3], 4
      %s317 = int_to_ptr.vmem [resolvable:$true] %s316
      %319 = dma.vmem_to_hbm [thread:$0]  %s317, 16, %s2, [#allocation4]
    $region57: #{custom-call.2} parent=1 // pred_fallthru
      _
    // Predicated region
    $region58: #{custom-call.2} parent=1 // pred_check
      _
    $region59: #{custom-call.2} parent=1 // pred_check_branch
      %321 = sbr.rel (0) target = $region61
    $region60: #{custom-call.2} parent=1 // pred_region
      %s323 = ssub.s32 16, 16
      %324 = vsyncadd [#allocation7], %s323
      %s325 = sshll.u32 [#allocation6], 4
      %s326 = int_to_ptr.vmem [resolvable:$true] %s325
      %328 = dma.vmem_to_hbm [thread:$0]  %s326, 16, %s3, [#allocation7]
    $region61: #{custom-call.2} parent=1 // pred_fallthru
      _
    // Predicated region
    $region62: #{custom-call.2} parent=1 // pred_check
      _
    $region63: #{custom-call.2} parent=1 // pred_check_branch
      %330 = sbr.rel (0) target = $region65
    $region64: #{custom-call.2} parent=1 // pred_region
      %331 = dma.done [#allocation4], 16
    $region65: #{custom-call.2} parent=1 // pred_fallthru
      _
    // Predicated region
    $region66: #{custom-call.2} parent=1 // pred_check
      _
    $region67: #{custom-call.2} parent=1 // pred_check_branch
      %333 = sbr.rel (0) target = $region69
    $region68: #{custom-call.2} parent=1 // pred_region
      %334 = dma.done [#allocation7], 16
    $region69: #{custom-call.2} parent=1 // pred_fallthru
      _
    %335 = vsyncpa [#allocation4], 1
    %336 = vsyncpa [#allocation7], 1

// kernel: flowstep_forward.1
$region0: #{flowstep_forward.1}
  #allocation0 [shape = 'u32[]', space=smem, size = 0x4, offset = 0x4, fixed_abs, tag = 'smem constant byte address 0x4 - core index']
  #allocation1 [shape = 'u32[144,128]{1,0:T(1,128)}', space=vmem, size = 0x12000, scoped, tag = 'internal scratch']
  %s0 = inlined_call_operand.vmem [shape: f32[2,8,16], index: 0, kind: input, shape index: {}]
  %s1 = inlined_call_operand.vmem [shape: f32[2,4,16], index: 1, kind: input, shape index: {}]
  %s2 = inlined_call_operand.vmem [shape: f32[8,8], index: 2, kind: input, shape index: {}]
  %s3 = inlined_call_operand.vmem [shape: f32[8,1], index: 3, kind: input, shape index: {}]
  %s4 = inlined_call_operand.vmem [shape: f32[32,8], index: 4, kind: input, shape index: {}]
  %s5 = inlined_call_operand.vmem [shape: f32[32,4], index: 5, kind: input, shape index: {}]
  %s6 = inlined_call_operand.vmem [shape: f32[32,1], index: 6, kind: input, shape index: {}]
  %s7 = inlined_call_operand.vmem [shape: f32[32,32], index: 7, kind: input, shape index: {}]
  %s8 = inlined_call_operand.vmem [shape: f32[32,1], index: 8, kind: input, shape index: {}]
  %s9 = inlined_call_operand.vmem [shape: f32[8,32], index: 9, kind: input, shape index: {}]
  %s10 = inlined_call_operand.vmem [shape: f32[8,1], index: 10, kind: input, shape index: {}]
  %s11 = inlined_call_operand.hbm [shape: f32[2,8,16], index: 11, kind: output, shape index: {0}]
  %s12 = inlined_call_operand.vmem [shape: f32[2,1,1,1], index: 12, kind: output, shape index: {1}]
  %13 = xla_tuple %s11, %s12
  %s14 = sld [smem:[#allocation0]]
  $region85: #{flowstep_forward.1} parent=0
    _
  %s16 = ssub.s32 1, %s14
  %s17 = scalar_select 0, %s16, %s14
  $region1: #{flowstep_forward.1} parent=0
    #allocation2 [shape = 'u8[8192]{0}', space=vmem, size = 0x2000, scoped, tag = 'output window, operand 0']
    #allocation3 [shape = 's32[2]{0}', space=sflag, size = 0x8, scoped, tag = 'scoped memory for flowstep_forward.1']
    %18 = vsyncpa [#allocation3], 0
    %s19 = scalar_lea.sflag [#allocation3], 1
    %20 = vsyncpa %s19, 0
    loop: start=0, step=1, limit=4
    $region2: #{flowstep_forward.1} parent=1 // loop_pre_header
      _
    $region3: #{flowstep_forward.1} parent=1 // loop_header
      %s22 = sphi 0, %s26
      %p23 = scmp.ge.s32.totalorder %s22, 4
      %s29 = sphi 0, %s41
      %s30 = sphi 0, %s37
      %s31 = sphi 0, %s29
      %s32 = sphi 0, %s30
      %s33 = sphi 0, %s31
      %s34 = sphi 0, %s32
      %s46 = sphi 0, %s48
      %s49 = sphi 0, %s46
      %s50 = sphi 0, %s49
      %s66 = sphi 0, %s50
      %s74 = sphi 0, %s76
      %s77 = sphi 0, %s74
      %s78 = sphi 0, %s77
      %s94 = sphi 0, %s78
      %s98 = sphi 0, %s98
      %s100 = sphi 0, %s98
      %s101 = sphi 0, %s100
      %s115 = sphi 0, %s101
      %s119 = sphi 0, %s119
      %s121 = sphi 0, %s119
      %s122 = sphi 0, %s121
      %s136 = sphi 0, %s122
      %s140 = sphi 0, %s140
      %s142 = sphi 0, %s140
      %s143 = sphi 0, %s142
      %s157 = sphi 0, %s143
      %s161 = sphi 0, %s161
      %s163 = sphi 0, %s161
      %s164 = sphi 0, %s163
      %s178 = sphi 0, %s164
      %s182 = sphi 0, %s182
      %s184 = sphi 0, %s182
      %s185 = sphi 0, %s184
      %s199 = sphi 0, %s185
      %s203 = sphi 0, %s203
      %s205 = sphi 0, %s203
      %s206 = sphi 0, %s205
      %s220 = sphi 0, %s206
      %s224 = sphi 0, %s224
      %s226 = sphi 0, %s224
      %s227 = sphi 0, %s226
      %s241 = sphi 0, %s227
      %s245 = sphi 0, %s245
      %s247 = sphi 0, %s245
      %s248 = sphi 0, %s247
      %s262 = sphi 0, %s248
      %s266 = sphi 0, %s266
      %s268 = sphi 0, %s266
      %s269 = sphi 0, %s268
      %s283 = sphi 0, %s269
      %s291 = sphi 0, %s293
      %s294 = sphi 0, %s291
      %s295 = sphi 0, %s294
      %s311 = sphi 0, %s295
      %s319 = sphi 0, %s321
      %s322 = sphi 0, %s319
      %s323 = sphi 0, %s322
      %s339 = sphi 0, %s323
    $region4: #{flowstep_forward.1} parent=1 // loop_header_branch
      %25 = sbr.rel (%p23) target = $region8
    $region5: #{flowstep_forward.1} parent=1 // loop_body
      %s27 = ssub.s32 %s22, 1
      %s28 = ssub.s32 %s22, 2
      %s35 = sadd.s32 1, %s30
      %p36 = scmp.ge.s32.totalorder %s35, 1
      %s37 = scalar_select %p36, 0, %s35
      %s38 = sadd.s32 1, %s29
      %s39 = scalar_select %p36, %s38, %s29
      %p40 = scmp.ge.s32.totalorder %s39, 2
      %s41 = scalar_select %p40, 0, %s39
      %s42 = ssub.s32 %s29, %s41
      %s43 = ssub.s32 %s30, %s37
      %s44 = sor.u32 %s42, %s43
      %p45 = scmp.eq.s32.totalorder %s44, 0
      %s47 = sadd.s32 %s46, 1
      %s48 = scalar_select %p45, %s46, %s47
      %p51 = pneg %p45
      %p52 = scmp.eq.s32.totalorder %s22, 1
      %p53 = por %p51, %p52
      %p54 = scmp.ne.s32.totalorder %s46, %s49
      %p55 = scmp.eq.s32.totalorder %s22, 0
      %p56 = por %p54, %p55
      %p57 = scmp.ne.s32.totalorder %s46, %s49
      %p58 = scmp.eq.s32.totalorder %s27, 1
      %p59 = por %p57, %p58
      %p60 = scmp.ne.s32.totalorder %s49, %s50
      %p61 = scmp.eq.s32.totalorder %s27, 0
      %p62 = por %p60, %p61
      %p63 = scmp.ne.s32.totalorder %s49, %s50
      %p64 = scmp.eq.s32.totalorder %s28, 1
      %p65 = por %p63, %p64
      %p67 = scmp.ne.s32.totalorder %s50, %s66
      %p68 = scmp.eq.s32.totalorder %s28, 0
      %p69 = por %p67, %p68
      %s70 = ssub.s32 %s29, %s41
      %s71 = ssub.s32 %s30, %s37
      %s72 = sor.u32 %s70, %s71
      %p73 = scmp.eq.s32.totalorder %s72, 0
      %s75 = sadd.s32 %s74, 1
      %s76 = scalar_select %p73, %s74, %s75
      %p79 = pneg %p73
      %p80 = scmp.eq.s32.totalorder %s22, 1
      %p81 = por %p79, %p80
      %p82 = scmp.ne.s32.totalorder %s74, %s77
      %p83 = scmp.eq.s32.totalorder %s22, 0
      %p84 = por %p82, %p83
      %p85 = scmp.ne.s32.totalorder %s74, %s77
      %p86 = scmp.eq.s32.totalorder %s27, 1
      %p87 = por %p85, %p86
      %p88 = scmp.ne.s32.totalorder %s77, %s78
      %p89 = scmp.eq.s32.totalorder %s27, 0
      %p90 = por %p88, %p89
      %p91 = scmp.ne.s32.totalorder %s77, %s78
      %p92 = scmp.eq.s32.totalorder %s28, 1
      %p93 = por %p91, %p92
      %p95 = scmp.ne.s32.totalorder %s78, %s94
      %p96 = scmp.eq.s32.totalorder %s28, 0
      %p97 = por %p95, %p96
      %s99 = sadd.s32 %s98, 1
      %p102 = scmp.eq.s32.totalorder %s22, 1
      %p103 = scmp.ne.s32.totalorder %s98, %s100
      %p104 = scmp.eq.s32.totalorder %s22, 0
      %p105 = por %p103, %p104
      %p106 = scmp.ne.s32.totalorder %s98, %s100
      %p107 = scmp.eq.s32.totalorder %s27, 1
      %p108 = por %p106, %p107
      %p109 = scmp.ne.s32.totalorder %s100, %s101
      %p110 = scmp.eq.s32.totalorder %s27, 0
      %p111 = por %p109, %p110
      %p112 = scmp.ne.s32.totalorder %s100, %s101
      %p113 = scmp.eq.s32.totalorder %s28, 1
      %p114 = por %p112, %p113
      %p116 = scmp.ne.s32.totalorder %s101, %s115
      %p117 = scmp.eq.s32.totalorder %s28, 0
      %p118 = por %p116, %p117
      %s120 = sadd.s32 %s119, 1
      %p123 = scmp.eq.s32.totalorder %s22, 1
      %p124 = scmp.ne.s32.totalorder %s119, %s121
      %p125 = scmp.eq.s32.totalorder %s22, 0
      %p126 = por %p124, %p125
      %p127 = scmp.ne.s32.totalorder %s119, %s121
      %p128 = scmp.eq.s32.totalorder %s27, 1
      %p129 = por %p127, %p128
      %p130 = scmp.ne.s32.totalorder %s121, %s122
      %p131 = scmp.eq.s32.totalorder %s27, 0
      %p132 = por %p130, %p131
      %p133 = scmp.ne.s32.totalorder %s121, %s122
      %p134 = scmp.eq.s32.totalorder %s28, 1
      %p135 = por %p133, %p134
      %p137 = scmp.ne.s32.totalorder %s122, %s136
      %p138 = scmp.eq.s32.totalorder %s28, 0
      %p139 = por %p137, %p138
      %s141 = sadd.s32 %s140, 1
      %p144 = scmp.eq.s32.totalorder %s22, 1
      %p145 = scmp.ne.s32.totalorder %s140, %s142
      %p146 = scmp.eq.s32.totalorder %s22, 0
      %p147 = por %p145, %p146
      %p148 = scmp.ne.s32.totalorder %s140, %s142
      %p149 = scmp.eq.s32.totalorder %s27, 1
      %p150 = por %p148, %p149
      %p151 = scmp.ne.s32.totalorder %s142, %s143
      %p152 = scmp.eq.s32.totalorder %s27, 0
      %p153 = por %p151, %p152
      %p154 = scmp.ne.s32.totalorder %s142, %s143
      %p155 = scmp.eq.s32.totalorder %s28, 1
      %p156 = por %p154, %p155
      %p158 = scmp.ne.s32.totalorder %s143, %s157
      %p159 = scmp.eq.s32.totalorder %s28, 0
      %p160 = por %p158, %p159
      %s162 = sadd.s32 %s161, 1
      %p165 = scmp.eq.s32.totalorder %s22, 1
      %p166 = scmp.ne.s32.totalorder %s161, %s163
      %p167 = scmp.eq.s32.totalorder %s22, 0
      %p168 = por %p166, %p167
      %p169 = scmp.ne.s32.totalorder %s161, %s163
      %p170 = scmp.eq.s32.totalorder %s27, 1
      %p171 = por %p169, %p170
      %p172 = scmp.ne.s32.totalorder %s163, %s164
      %p173 = scmp.eq.s32.totalorder %s27, 0
      %p174 = por %p172, %p173
      %p175 = scmp.ne.s32.totalorder %s163, %s164
      %p176 = scmp.eq.s32.totalorder %s28, 1
      %p177 = por %p175, %p176
      %p179 = scmp.ne.s32.totalorder %s164, %s178
      %p180 = scmp.eq.s32.totalorder %s28, 0
      %p181 = por %p179, %p180
      %s183 = sadd.s32 %s182, 1
      %p186 = scmp.eq.s32.totalorder %s22, 1
      %p187 = scmp.ne.s32.totalorder %s182, %s184
      %p188 = scmp.eq.s32.totalorder %s22, 0
      %p189 = por %p187, %p188
      %p190 = scmp.ne.s32.totalorder %s182, %s184
      %p191 = scmp.eq.s32.totalorder %s27, 1
      %p192 = por %p190, %p191
      %p193 = scmp.ne.s32.totalorder %s184, %s185
      %p194 = scmp.eq.s32.totalorder %s27, 0
      %p195 = por %p193, %p194
      %p196 = scmp.ne.s32.totalorder %s184, %s185
      %p197 = scmp.eq.s32.totalorder %s28, 1
      %p198 = por %p196, %p197
      %p200 = scmp.ne.s32.totalorder %s185, %s199
      %p201 = scmp.eq.s32.totalorder %s28, 0
      %p202 = por %p200, %p201
      %s204 = sadd.s32 %s203, 1
      %p207 = scmp.eq.s32.totalorder %s22, 1
      %p208 = scmp.ne.s32.totalorder %s203, %s205
      %p209 = scmp.eq.s32.totalorder %s22, 0
      %p210 = por %p208, %p209
      %p211 = scmp.ne.s32.totalorder %s203, %s205
      %p212 = scmp.eq.s32.totalorder %s27, 1
      %p213 = por %p211, %p212
      %p214 = scmp.ne.s32.totalorder %s205, %s206
      %p215 = scmp.eq.s32.totalorder %s27, 0
      %p216 = por %p214, %p215
      %p217 = scmp.ne.s32.totalorder %s205, %s206
      %p218 = scmp.eq.s32.totalorder %s28, 1
      %p219 = por %p217, %p218
      %p221 = scmp.ne.s32.totalorder %s206, %s220
      %p222 = scmp.eq.s32.totalorder %s28, 0
      %p223 = por %p221, %p222
      %s225 = sadd.s32 %s224, 1
      %p228 = scmp.eq.s32.totalorder %s22, 1
      %p229 = scmp.ne.s32.totalorder %s224, %s226
      %p230 = scmp.eq.s32.totalorder %s22, 0
      %p231 = por %p229, %p230
      %p232 = scmp.ne.s32.totalorder %s224, %s226
      %p233 = scmp.eq.s32.totalorder %s27, 1
      %p234 = por %p232, %p233
      %p235 = scmp.ne.s32.totalorder %s226, %s227
      %p236 = scmp.eq.s32.totalorder %s27, 0
      %p237 = por %p235, %p236
      %p238 = scmp.ne.s32.totalorder %s226, %s227
      %p239 = scmp.eq.s32.totalorder %s28, 1
      %p240 = por %p238, %p239
      %p242 = scmp.ne.s32.totalorder %s227, %s241
      %p243 = scmp.eq.s32.totalorder %s28, 0
      %p244 = por %p242, %p243
      %s246 = sadd.s32 %s245, 1
      %p249 = scmp.eq.s32.totalorder %s22, 1
      %p250 = scmp.ne.s32.totalorder %s245, %s247
      %p251 = scmp.eq.s32.totalorder %s22, 0
      %p252 = por %p250, %p251
      %p253 = scmp.ne.s32.totalorder %s245, %s247
      %p254 = scmp.eq.s32.totalorder %s27, 1
      %p255 = por %p253, %p254
      %p256 = scmp.ne.s32.totalorder %s247, %s248
      %p257 = scmp.eq.s32.totalorder %s27, 0
      %p258 = por %p256, %p257
      %p259 = scmp.ne.s32.totalorder %s247, %s248
      %p260 = scmp.eq.s32.totalorder %s28, 1
      %p261 = por %p259, %p260
      %p263 = scmp.ne.s32.totalorder %s248, %s262
      %p264 = scmp.eq.s32.totalorder %s28, 0
      %p265 = por %p263, %p264
      %s267 = sadd.s32 %s266, 1
      %p270 = scmp.eq.s32.totalorder %s22, 1
      %p271 = scmp.ne.s32.totalorder %s266, %s268
      %p272 = scmp.eq.s32.totalorder %s22, 0
      %p273 = por %p271, %p272
      %p274 = scmp.ne.s32.totalorder %s266, %s268
      %p275 = scmp.eq.s32.totalorder %s27, 1
      %p276 = por %p274, %p275
      %p277 = scmp.ne.s32.totalorder %s268, %s269
      %p278 = scmp.eq.s32.totalorder %s27, 0
      %p279 = por %p277, %p278
      %p280 = scmp.ne.s32.totalorder %s268, %s269
      %p281 = scmp.eq.s32.totalorder %s28, 1
      %p282 = por %p280, %p281
      %p284 = scmp.ne.s32.totalorder %s269, %s283
      %p285 = scmp.eq.s32.totalorder %s28, 0
      %p286 = por %p284, %p285
      %s287 = ssub.s32 %s29, %s41
      %s288 = ssub.s32 %s30, %s37
      %s289 = sor.u32 %s287, %s288
      %p290 = scmp.eq.s32.totalorder %s289, 0
      %s292 = sadd.s32 %s291, 1
      %s293 = scalar_select %p290, %s291, %s292
      %p296 = pneg %p290
      %p297 = scmp.eq.s32.totalorder %s22, 1
      %p298 = por %p296, %p297
      %p299 = scmp.ne.s32.totalorder %s291, %s294
      %p300 = scmp.eq.s32.totalorder %s22, 0
      %p301 = por %p299, %p300
      %p302 = scmp.ne.s32.totalorder %s291, %s294
      %p303 = scmp.eq.s32.totalorder %s27, 1
      %p304 = por %p302, %p303
      %p305 = scmp.ne.s32.totalorder %s294, %s295
      %p306 = scmp.eq.s32.totalorder %s27, 0
      %p307 = por %p305, %p306
      %p308 = scmp.ne.s32.totalorder %s294, %s295
      %p309 = scmp.eq.s32.totalorder %s28, 1
      %p310 = por %p308, %p309
      %p312 = scmp.ne.s32.totalorder %s295, %s311
      %p313 = scmp.eq.s32.totalorder %s28, 0
      %p314 = por %p312, %p313
      %s315 = ssub.s32 %s29, %s41
      %s316 = ssub.s32 %s30, %s37
      %s317 = sor.u32 %s315, %s316
      %p318 = scmp.eq.s32.totalorder %s317, 0
      %s320 = sadd.s32 %s319, 1
      %s321 = scalar_select %p318, %s319, %s320
      %p324 = pneg %p318
      %p325 = scmp.eq.s32.totalorder %s22, 1
      %p326 = por %p324, %p325
      %p327 = scmp.ne.s32.totalorder %s319, %s322
      %p328 = scmp.eq.s32.totalorder %s22, 0
      %p329 = por %p327, %p328
      %p330 = scmp.ne.s32.totalorder %s319, %s322
      %p331 = scmp.eq.s32.totalorder %s27, 1
      %p332 = por %p330, %p331
      %p333 = scmp.ne.s32.totalorder %s322, %s323
      %p334 = scmp.eq.s32.totalorder %s27, 0
      %p335 = por %p333, %p334
      %p336 = scmp.ne.s32.totalorder %s322, %s323
      %p337 = scmp.eq.s32.totalorder %s28, 1
      %p338 = por %p336, %p337
      %p340 = scmp.ne.s32.totalorder %s323, %s339
      %p341 = scmp.eq.s32.totalorder %s28, 0
      %p342 = por %p340, %p341
      %p343 = scmp.le.s32.totalorder 1, %s22
      %p344 = scmp.lt.s32.totalorder %s22, 3
      %p345 = pnand %p343, %p344
      %p346 = pneg %p345
      // Predicated region
      $region9: #{flowstep_forward.1} parent=5 // pred_check
        _
      $region10: #{flowstep_forward.1} parent=5 // pred_check_branch
        %348 = sbr.rel (%p345) target = $region12
      $region11: #{flowstep_forward.1} parent=5 // pred_region
        %s349 = ssub.s32 %s22, 1
        // Predicated region
        $region13: #{flowstep_forward.1} parent=11 // pred_check
          %p350 = pneg %p111
        $region14: #{flowstep_forward.1} parent=11 // pred_check_branch
          %352 = sbr.rel (%p350) target = $region16
        $region15: #{flowstep_forward.1} parent=11 // pred_region
          _
        $region16: #{flowstep_forward.1} parent=11 // pred_fallthru
          _
        // Predicated region
        $region17: #{flowstep_forward.1} parent=11 // pred_check
          %p353 = pneg %p132
        $region18: #{flowstep_forward.1} parent=11 // pred_check_branch
          %355 = sbr.rel (%p353) target = $region20
        $region19: #{flowstep_forward.1} parent=11 // pred_region
          _
        $region20: #{flowstep_forward.1} parent=11 // pred_fallthru
          _
        // Predicated region
        $region21: #{flowstep_forward.1} parent=11 // pred_check
          %p356 = pneg %p153
        $region22: #{flowstep_forward.1} parent=11 // pred_check_branch
          %358 = sbr.rel (%p356) target = $region24
        $region23: #{flowstep_forward.1} parent=11 // pred_region
          _
        $region24: #{flowstep_forward.1} parent=11 // pred_fallthru
          _
        // Predicated region
        $region25: #{flowstep_forward.1} parent=11 // pred_check
          %p359 = pneg %p174
        $region26: #{flowstep_forward.1} parent=11 // pred_check_branch
          %361 = sbr.rel (%p359) target = $region28
        $region27: #{flowstep_forward.1} parent=11 // pred_region
          _
        $region28: #{flowstep_forward.1} parent=11 // pred_fallthru
          _
        // Predicated region
        $region29: #{flowstep_forward.1} parent=11 // pred_check
          %p362 = pneg %p195
        $region30: #{flowstep_forward.1} parent=11 // pred_check_branch
          %364 = sbr.rel (%p362) target = $region32
        $region31: #{flowstep_forward.1} parent=11 // pred_region
          _
        $region32: #{flowstep_forward.1} parent=11 // pred_fallthru
          _
        // Predicated region
        $region33: #{flowstep_forward.1} parent=11 // pred_check
          %p365 = pneg %p216
        $region34: #{flowstep_forward.1} parent=11 // pred_check_branch
          %367 = sbr.rel (%p365) target = $region36
        $region35: #{flowstep_forward.1} parent=11 // pred_region
          _
        $region36: #{flowstep_forward.1} parent=11 // pred_fallthru
          _
        // Predicated region
        $region37: #{flowstep_forward.1} parent=11 // pred_check
          %p368 = pneg %p237
        $region38: #{flowstep_forward.1} parent=11 // pred_check_branch
          %370 = sbr.rel (%p368) target = $region40
        $region39: #{flowstep_forward.1} parent=11 // pred_region
          _
        $region40: #{flowstep_forward.1} parent=11 // pred_fallthru
          _
        // Predicated region
        $region41: #{flowstep_forward.1} parent=11 // pred_check
          %p371 = pneg %p258
        $region42: #{flowstep_forward.1} parent=11 // pred_check_branch
          %373 = sbr.rel (%p371) target = $region44
        $region43: #{flowstep_forward.1} parent=11 // pred_region
          _
        $region44: #{flowstep_forward.1} parent=11 // pred_fallthru
          _
        // Predicated region
        $region45: #{flowstep_forward.1} parent=11 // pred_check
          %p374 = pneg %p279
        $region46: #{flowstep_forward.1} parent=11 // pred_check_branch
          %376 = sbr.rel (%p374) target = $region48
        $region47: #{flowstep_forward.1} parent=11 // pred_region
          _
        $region48: #{flowstep_forward.1} parent=11 // pred_fallthru
          _
      $region12: #{flowstep_forward.1} parent=5 // pred_fallthru
        _
      %p377 = scmp.lt.s32.totalorder %s22, 2
      // Predicated region
      $region49: #{flowstep_forward.1} parent=5 // pred_check
        %p378 = pneg %p377
      $region50: #{flowstep_forward.1} parent=5 // pred_check_branch
        %380 = sbr.rel (%p378) target = $region52
      $region51: #{flowstep_forward.1} parent=5 // pred_region
        // Predicated region
        $region53: #{flowstep_forward.1} parent=51 // pred_check
          %p381 = pneg %p56
        $region54: #{flowstep_forward.1} parent=51 // pred_check_branch
          %383 = sbr.rel (%p381) target = $region56
        $region55: #{flowstep_forward.1} parent=51 // pred_region
          %p384 = scmp.lt.s32.totalorder %s29, 1
          %s385 = scalar_select %p384, %s29, 1
          %p386 = scmp.lt.s32.totalorder %s30, 0
          %s387 = scalar_select %p386, %s30, 0
          %s388 = sadd.s32 %s387, %s385
          %s389 = smul.addr %s388, 8
          %s390 = scalar_lea.vmem %s0, %s389
        $region56: #{flowstep_forward.1} parent=51 // pred_fallthru
          _
        // Predicated region
        $region57: #{flowstep_forward.1} parent=51 // pred_check
          %p391 = pneg %p84
        $region58: #{flowstep_forward.1} parent=51 // pred_check_branch
          %393 = sbr.rel (%p391) target = $region60
        $region59: #{flowstep_forward.1} parent=51 // pred_region
          %p394 = scmp.lt.s32.totalorder %s29, 1
          %s395 = scalar_select %p394, %s29, 1
          %p396 = scmp.lt.s32.totalorder %s30, 0
          %s397 = scalar_select %p396, %s30, 0
          %s398 = sadd.s32 %s397, %s395
          %s399 = smul.addr %s398, 4
          %s400 = scalar_lea.vmem %s1, %s399
        $region60: #{flowstep_forward.1} parent=51 // pred_fallthru
          _
      $region52: #{flowstep_forward.1} parent=5 // pred_fallthru
        _
      %p401 = scmp.le.s32.totalorder 1, %s22
      %p402 = scmp.lt.s32.totalorder %s22, 3
      %p403 = pnand %p401, %p402
      %p404 = pneg %p403
      // Predicated region
      $region61: #{flowstep_forward.1} parent=5 // pred_check
        _
      $region62: #{flowstep_forward.1} parent=5 // pred_check_branch
        %406 = sbr.rel (%p403) target = $region64
      $region63: #{flowstep_forward.1} parent=5 // pred_region
        %s407 = ssub.s32 %s22, 1
        %p408 = scmp.lt.s32.totalorder %s31, 1
        %s409 = scalar_select %p408, %s31, 1
        %p410 = scmp.lt.s32.totalorder %s32, 0
        %s411 = scalar_select %p410, %s32, 0
        %s412 = sadd.s32 %s411, %s409
        %s413 = smul.addr %s412, 8
        %s414 = scalar_lea.vmem %s0, %s413
        %p415 = pneg %p62
        %p416 = pneg %p59
        %p417 = scmp.lt.s32.totalorder %s31, 1
        %s418 = scalar_select %p417, %s31, 1
        %p419 = scmp.lt.s32.totalorder %s32, 0
        %s420 = scalar_select %p419, %s32, 0
        %s421 = sadd.s32 %s420, %s418
        %s422 = smul.addr %s421, 4
        %s423 = scalar_lea.vmem %s1, %s422
        %p424 = pneg %p90
        %p425 = pneg %p87
        %p426 = pneg %p111
        %p427 = pneg %p108
        %p428 = pneg %p132
        %p429 = pneg %p129
        %p430 = pneg %p153
        %p431 = pneg %p150
        %p432 = pneg %p174
        %p433 = pneg %p171
        %p434 = pneg %p195
        %p435 = pneg %p192
        %p436 = pneg %p216
        %p437 = pneg %p213
        %p438 = pneg %p237
        %p439 = pneg %p234
        %p440 = pneg %p258
        %p441 = pneg %p255
        %p442 = pneg %p279
        %p443 = pneg %p276
        %p444 = pneg %p307
        %p445 = pneg %p304
        %s446 = sand.u32 %s294, 1
        %s447 = scalar_lea.sflag [#allocation3], %s446
        %s448 = sand.u32 %s294, 1
        %s449 = smul.addr %s448, 8
        %s450 = scalar_lea.vmem [#allocation2], %s449
        %p451 = pneg %p335
        %p452 = pneg %p332
        %p453 = scmp.lt.s32.totalorder %s31, 1
        %s454 = scalar_select %p453, %s31, 1
        %p455 = scmp.lt.s32.totalorder %s32, 0
        %s456 = scalar_select %p455, %s32, 0
        %s457 = sadd.s32 %s456, %s454
        %s458 = scalar_lea.vmem %s12, %s457
        %p459 = scmp.lt.s32.totalorder %s31, 1
        %s460 = scalar_select %p459, %s31, 1
        %p461 = scmp.lt.s32.totalorder %s32, 0
        %s462 = scalar_select %p461, %s32, 0
        %s463 = sadd.s32 %s462, %s460
        %s464 = smul.addr %s463, 8
        %s465 = scalar_lea.vmem %s0, %s464
        %p466 = scmp.lt.s32.totalorder %s31, 1
        %s467 = scalar_select %p466, %s31, 1
        %p468 = scmp.lt.s32.totalorder %s32, 0
        %s469 = scalar_select %p468, %s32, 0
        %s470 = sadd.s32 %s469, %s467
        %s471 = smul.addr %s470, 4
        %s472 = scalar_lea.vmem %s1, %s471
        %p473 = scmp.lt.s32.totalorder %s31, 1
        %s474 = scalar_select %p473, %s31, 1
        %p475 = scmp.lt.s32.totalorder %s32, 0
        %s476 = scalar_select %p475, %s32, 0
        %s477 = sadd.s32 %s476, %s474
        %s478 = scalar_lea.vmem %s12, %s477
        %v479 = vld [vmem:[%s465] sm:$0xff]
        %v480 = vld [vmem:[%s472] sm:$0xf]
        %v481 = vld [vmem:[%s2] sm:$0xff]
        %v482 = vld [vmem:[%s3] sm:$0xff]
        %484 = vset.pattern.permute.xlu0 0
        %485 = vperm.xlu0 %484, %v482
        %v486 = vpop.permute.xlu0 %485
        %vm488 = vcmask 64512
        %v490 = vsel %vm488, %v481, 0
        %492 = vmatprep.subr.mxu0 0.0
        %493 = vmatpush1.msra.mxu0 0.0
        %494 = vmatprep.subr.mxu0 0.0
        %495 = vmatpush1.msra.mxu0 0.0
        %496 = vmatprep.subr.mxu0 0.0
        %497 = vmatpush1.msra.mxu0 0.0
        %498 = vmatprep.subr.mxu0 0.0
        %499 = vmatpush1.msra.mxu0 0.0
        %500 = vmatprep.subr.mxu0 0.0
        %501 = vmatpush1.msra.mxu0 0.0
        %502 = vmatprep.subr.mxu0 0.0
        %503 = vmatpush1.msra.mxu0 0.0
        %504 = vmatprep.subr.mxu0 0.0
        %505 = vmatpush1.msra.mxu0 0.0
        %506 = vmatprep.subr.mxu0 0.0
        %507 = vmatpush1.msra.mxu0 0.0
        %508 = vmatprep.subr.mxu0 0.0
        %509 = vmatpush1.msra.mxu0 0.0
        %510 = vmatprep.subr.mxu0 0.0
        %511 = vmatpush1.msra.mxu0 0.0
        %512 = vmatprep.subr.mxu0 0.0
        %513 = vmatpush1.msra.mxu0 0.0
        %514 = vmatprep.subr.mxu0 0.0
        %515 = vmatpush1.msra.mxu0 0.0
        %516 = vmatprep.subr.mxu0 0.0
        %517 = vmatpush1.msra.mxu0 0.0
        %518 = vmatprep.subr.mxu0 0.0
        %519 = vmatpush1.msra.mxu0 0.0
        %520 = vmatprep.subr.mxu0 0.0
        %521 = vmatpush1.msra.mxu0 0.0
        %522 = vmatprep.subr.mxu0 0.0
        %523 = vmatpush1.msra.mxu0 %v479
        %524 = vmatprep.subr.mxu0 0.0
        %525 = vmatpush2.msra.mxu0 0.0
        %526 = vmatprep.subr.mxu0 0.0
        %527 = vmatpush2.msra.mxu0 0.0
        %528 = vmatprep.subr.mxu0 0.0
        %529 = vmatpush2.msra.mxu0 0.0
        %530 = vmatprep.subr.mxu0 0.0
        %531 = vmatpush2.msra.mxu0 0.0
        %532 = vmatprep.subr.mxu0 0.0
        %533 = vmatpush2.msra.mxu0 0.0
        %534 = vmatprep.subr.mxu0 0.0
        %535 = vmatpush2.msra.mxu0 0.0
        %536 = vmatprep.subr.mxu0 0.0
        %537 = vmatpush2.msra.mxu0 0.0
        %538 = vmatprep.subr.mxu0 0.0
        %539 = vmatpush2.msra.mxu0 0.0
        %540 = vmatprep.subr.mxu0 0.0
        %541 = vmatpush2.msra.mxu0 0.0
        %542 = vmatprep.subr.mxu0 0.0
        %543 = vmatpush2.msra.mxu0 0.0
        %544 = vmatprep.subr.mxu0 0.0
        %545 = vmatpush2.msra.mxu0 0.0
        %546 = vmatprep.subr.mxu0 0.0
        %547 = vmatpush2.msra.mxu0 0.0
        %548 = vmatprep.subr.mxu0 0.0
        %549 = vmatpush2.msra.mxu0 0.0
        %550 = vmatprep.subr.mxu0 0.0
        %551 = vmatpush2.msra.mxu0 0.0
        %552 = vmatprep.subr.mxu0 0.0
        %553 = vmatpush2.msra.mxu0 0.0
        %554 = vmatprep.subr.mxu0 0.0
        %555 = vmatpush2.msra.mxu0 0.0
        %556 = vmatprep.mubr.f32.mxu0 0.0
        %557 = vmatmul.mubr.f32.gmra.mxu0 %v490
        %v558 = vpop.f32.mrf.mxu0
        %v559 = vadd.f32 %v486, %v558
        %v560 = vpop.f32.mrf.mxu0
        %561 = vdwg.mxu0
        %v562 = vld [vmem:[%s4] sm:$0xff]
        %v563 = vld [vmem:[%s4 + $0x8] sm:$0xff]
        %v564 = vld [vmem:[%s4 + $0x10] sm:$0xff]
        %v565 = vld [vmem:[%s4 + $0x18] sm:$0xff]
        %v566 = vld [vmem:[%s5] sm:$0xff]
        %v567 = vld [vmem:[%s5 + $0x8] sm:$0xff]
        %v568 = vld [vmem:[%s5 + $0x10] sm:$0xff]
        %v569 = vld [vmem:[%s5 + $0x18] sm:$0xff]
        %vm570 = vcmask 31744
        %v572 = vsel %vm570, %v566, 0
        %v575 = vsel %vm570, %v567, 0
        %v578 = vsel %vm570, %v568, 0
        %v581 = vsel %vm570, %v569, 0
        %vm583 = vcmask 1043456
        %v585 = vsel %vm583, %v480, 0
        %587 = vmatprep.subr.mxu0 0.0
        %588 = vmatpush1.msra.mxu0 0.0
        %589 = vmatprep.subr.mxu0 0.0
        %590 = vmatpush1.msra.mxu0 0.0
        %591 = vmatprep.subr.mxu0 0.0
        %592 = vmatpush1.msra.mxu0 0.0
        %593 = vmatprep.subr.mxu0 0.0
        %594 = vmatpush1.msra.mxu0 0.0
        %595 = vmatprep.subr.mxu0 0.0
        %596 = vmatpush1.msra.mxu0 0.0
        %597 = vmatprep.subr.mxu0 0.0
        %598 = vmatpush1.msra.mxu0 0.0
        %599 = vmatprep.subr.mxu0 0.0
        %600 = vmatpush1.msra.mxu0 0.0
        %601 = vmatprep.subr.mxu0 0.0
        %602 = vmatpush1.msra.mxu0 0.0
        %603 = vmatprep.subr.mxu0 0.0
        %604 = vmatpush1.msra.mxu0 0.0
        %605 = vmatprep.subr.mxu0 0.0
        %606 = vmatpush1.msra.mxu0 0.0
        %607 = vmatprep.subr.mxu0 0.0
        %608 = vmatpush1.msra.mxu0 0.0
        %609 = vmatprep.subr.mxu0 0.0
        %610 = vmatpush1.msra.mxu0 0.0
        %611 = vmatprep.subr.mxu0 0.0
        %612 = vmatpush1.msra.mxu0 0.0
        %613 = vmatprep.subr.mxu0 0.0
        %614 = vmatpush1.msra.mxu0 0.0
        %615 = vmatprep.subr.mxu0 0.0
        %616 = vmatpush1.msra.mxu0 0.0
        %617 = vmatprep.subr.mxu0 0.0
        %618 = vmatpush1.msra.mxu0 %v585
        %619 = vmatprep.subr.mxu0 0.0
        %620 = vmatpush2.msra.mxu0 0.0
        %621 = vmatprep.subr.mxu0 0.0
        %622 = vmatpush2.msra.mxu0 0.0
        %623 = vmatprep.subr.mxu0 0.0
        %624 = vmatpush2.msra.mxu0 0.0
        %625 = vmatprep.subr.mxu0 0.0
        %626 = vmatpush2.msra.mxu0 0.0
        %627 = vmatprep.subr.mxu0 0.0
        %628 = vmatpush2.msra.mxu0 0.0
        %629 = vmatprep.subr.mxu0 0.0
        %630 = vmatpush2.msra.mxu0 0.0
        %631 = vmatprep.subr.mxu0 0.0
        %632 = vmatpush2.msra.mxu0 0.0
        %633 = vmatprep.subr.mxu0 0.0
        %634 = vmatpush2.msra.mxu0 0.0
        %635 = vmatprep.subr.mxu0 0.0
        %636 = vmatpush2.msra.mxu0 0.0
        %637 = vmatprep.subr.mxu0 0.0
        %638 = vmatpush2.msra.mxu0 0.0
        %639 = vmatprep.subr.mxu0 0.0
        %640 = vmatpush2.msra.mxu0 0.0
        %641 = vmatprep.subr.mxu0 0.0
        %642 = vmatpush2.msra.mxu0 0.0
        %643 = vmatprep.subr.mxu0 0.0
        %644 = vmatpush2.msra.mxu0 0.0
        %645 = vmatprep.subr.mxu0 0.0
        %646 = vmatpush2.msra.mxu0 0.0
        %647 = vmatprep.subr.mxu0 0.0
        %648 = vmatpush2.msra.mxu0 0.0
        %649 = vmatprep.subr.mxu0 0.0
        %650 = vmatpush2.msra.mxu0 0.0
        %651 = vmatprep.mubr.f32.mxu0 0.0
        %652 = vmatmul.mubr.f32.gmra.mxu0 %v572
        %v653 = vpop.f32.mrf.mxu0
        %v654 = vadd.f32 0.0, %v653
        %v655 = vpop.f32.mrf.mxu0
        %656 = vmatprep.mubr.f32.mxu0 0.0
        %657 = vmatmul.mubr.f32.gmra.mxu0 %v575
        %v658 = vpop.f32.mrf.mxu0
        %v659 = vadd.f32 0.0, %v658
        %v660 = vpop.f32.mrf.mxu0
        %661 = vmatprep.mubr.f32.mxu0 0.0
        %662 = vmatmul.mubr.f32.gmra.mxu0 %v578
        %v663 = vpop.f32.mrf.mxu0
        %v664 = vadd.f32 0.0, %v663
        %v665 = vpop.f32.mrf.mxu0
        %666 = vmatprep.mubr.f32.mxu0 0.0
        %667 = vmatmul.mubr.f32.gmra.mxu0 %v581
        %v668 = vpop.f32.mrf.mxu0
        %v669 = vadd.f32 0.0, %v668
        %v670 = vpop.f32.mrf.mxu0
        %671 = vdwg.mxu0
        %v673 = vsel %vm488, %v562, 0
        %v676 = vsel %vm488, %v563, 0
        %v679 = vsel %vm488, %v564, 0
        %v682 = vsel %vm488, %v565, 0
        %684 = vmatprep.subr.mxu0 0.0
        %685 = vmatpush1.msra.mxu0 0.0
        %686 = vmatprep.subr.mxu0 0.0
        %687 = vmatpush1.msra.mxu0 0.0
        %688 = vmatprep.subr.mxu0 0.0
        %689 = vmatpush1.msra.mxu0 0.0
        %690 = vmatprep.subr.mxu0 0.0
        %691 = vmatpush1.msra.mxu0 0.0
        %692 = vmatprep.subr.mxu0 0.0
        %693 = vmatpush1.msra.mxu0 0.0
        %694 = vmatprep.subr.mxu0 0.0
        %695 = vmatpush1.msra.mxu0 0.0
        %696 = vmatprep.subr.mxu0 0.0
        %697 = vmatpush1.msra.mxu0 0.0
        %698 = vmatprep.subr.mxu0 0.0
        %699 = vmatpush1.msra.mxu0 0.0
        %700 = vmatprep.subr.mxu0 0.0
        %701 = vmatpush1.msra.mxu0 0.0
        %702 = vmatprep.subr.mxu0 0.0
        %703 = vmatpush1.msra.mxu0 0.0
        %704 = vmatprep.subr.mxu0 0.0
        %705 = vmatpush1.msra.mxu0 0.0
        %706 = vmatprep.subr.mxu0 0.0
        %707 = vmatpush1.msra.mxu0 0.0
        %708 = vmatprep.subr.mxu0 0.0
        %709 = vmatpush1.msra.mxu0 0.0
        %710 = vmatprep.subr.mxu0 0.0
        %711 = vmatpush1.msra.mxu0 0.0
        %712 = vmatprep.subr.mxu0 0.0
        %713 = vmatpush1.msra.mxu0 0.0
        %714 = vmatprep.subr.mxu0 0.0
        %715 = vmatpush1.msra.mxu0 %v479
        %716 = vmatprep.subr.mxu0 0.0
        %717 = vmatpush2.msra.mxu0 0.0
        %718 = vmatprep.subr.mxu0 0.0
        %719 = vmatpush2.msra.mxu0 0.0
        %720 = vmatprep.subr.mxu0 0.0
        %721 = vmatpush2.msra.mxu0 0.0
        %722 = vmatprep.subr.mxu0 0.0
        %723 = vmatpush2.msra.mxu0 0.0
        %724 = vmatprep.subr.mxu0 0.0
        %725 = vmatpush2.msra.mxu0 0.0
        %726 = vmatprep.subr.mxu0 0.0
        %727 = vmatpush2.msra.mxu0 0.0
        %728 = vmatprep.subr.mxu0 0.0
        %729 = vmatpush2.msra.mxu0 0.0
        %730 = vmatprep.subr.mxu0 0.0
        %731 = vmatpush2.msra.mxu0 0.0
        %732 = vmatprep.subr.mxu0 0.0
        %733 = vmatpush2.msra.mxu0 0.0
        %734 = vmatprep.subr.mxu0 0.0
        %735 = vmatpush2.msra.mxu0 0.0
        %736 = vmatprep.subr.mxu0 0.0
        %737 = vmatpush2.msra.mxu0 0.0
        %738 = vmatprep.subr.mxu0 0.0
        %739 = vmatpush2.msra.mxu0 0.0
        %740 = vmatprep.subr.mxu0 0.0
        %741 = vmatpush2.msra.mxu0 0.0
        %742 = vmatprep.subr.mxu0 0.0
        %743 = vmatpush2.msra.mxu0 0.0
        %744 = vmatprep.subr.mxu0 0.0
        %745 = vmatpush2.msra.mxu0 0.0
        %746 = vmatprep.subr.mxu0 0.0
        %747 = vmatpush2.msra.mxu0 0.0
        %748 = vmatprep.mubr.f32.mxu0 0.0
        %749 = vmatmul.mubr.f32.gmra.mxu0 %v673
        %v750 = vpop.f32.mrf.mxu0
        %v751 = vadd.f32 %v654, %v750
        %v752 = vpop.f32.mrf.mxu0
        %753 = vmatprep.mubr.f32.mxu0 0.0
        %754 = vmatmul.mubr.f32.gmra.mxu0 %v676
        %v755 = vpop.f32.mrf.mxu0
        %v756 = vadd.f32 %v659, %v755
        %v757 = vpop.f32.mrf.mxu0
        %758 = vmatprep.mubr.f32.mxu0 0.0
        %759 = vmatmul.mubr.f32.gmra.mxu0 %v679
        %v760 = vpop.f32.mrf.mxu0
        %v761 = vadd.f32 %v664, %v760
        %v762 = vpop.f32.mrf.mxu0
        %763 = vmatprep.mubr.f32.mxu0 0.0
        %764 = vmatmul.mubr.f32.gmra.mxu0 %v682
        %v765 = vpop.f32.mrf.mxu0
        %v766 = vadd.f32 %v669, %v765
        %v767 = vpop.f32.mrf.mxu0
        %768 = vdwg.mxu0
        %v769 = vld [vmem:[%s6] sm:$0xff]
        %v770 = vld [vmem:[%s6 + $0x8] sm:$0xff]
        %v771 = vld [vmem:[%s6 + $0x10] sm:$0xff]
        %v772 = vld [vmem:[%s6 + $0x18] sm:$0xff]
        %774 = vset.pattern.permute.xlu0 0
        %775 = vperm.xlu0 %774, %v769
        %v776 = vpop.permute.xlu0 %775
        %779 = vset.pattern.permute.xlu0 0
        %780 = vperm.xlu0 %779, %v770
        %v781 = vpop.permute.xlu0 %780
        %784 = vset.pattern.permute.xlu0 0
        %785 = vperm.xlu0 %784, %v771
        %v786 = vpop.permute.xlu0 %785
        %789 = vset.pattern.permute.xlu0 0
        %790 = vperm.xlu0 %789, %v772
        %v791 = vpop.permute.xlu0 %790
        %v793 = vadd.f32 %v751, %v776
        %v794 = vadd.f32 %v756, %v781
        %v795 = vadd.f32 %v761, %v786
        %v796 = vadd.f32 %v766, %v791
        %v797 = vmax.f32 %v793, 0.0
        %v798 = vmax.f32 %v794, 0.0
        %v799 = vmax.f32 %v795, 0.0
        %v800 = vmax.f32 %v796, 0.0
        %v801 = vld [vmem:[%s7] sm:$0xff]
        %v802 = vld [vmem:[%s7 + $0x8] sm:$0xff]
        %v803 = vld [vmem:[%s7 + $0x10] sm:$0xff]
        %v804 = vld [vmem:[%s7 + $0x18] sm:$0xff]
        %v805 = vld [vmem:[%s8] sm:$0xff]
        %v806 = vld [vmem:[%s8 + $0x8] sm:$0xff]
        %v807 = vld [vmem:[%s8 + $0x10] sm:$0xff]
        %v808 = vld [vmem:[%s8 + $0x18] sm:$0xff]
        %810 = vset.pattern.permute.xlu0 0
        %811 = vperm.xlu0 %810, %v805
        %v812 = vpop.permute.xlu0 %811
        %815 = vset.pattern.permute.xlu0 0
        %816 = vperm.xlu0 %815, %v806
        %v817 = vpop.permute.xlu0 %816
        %820 = vset.pattern.permute.xlu0 0
        %821 = vperm.xlu0 %820, %v807
        %v822 = vpop.permute.xlu0 %821
        %825 = vset.pattern.permute.xlu0 0
        %826 = vperm.xlu0 %825, %v808
        %v827 = vpop.permute.xlu0 %826
        %vm829 = vcmask 261120
        %v831 = vsel %vm829, %v801, 0
        %v834 = vsel %vm829, %v802, 0
        %v837 = vsel %vm829, %v803, 0
        %v840 = vsel %vm829, %v804, 0
        %842 = vmatprep.subr.mxu0 0.0
        %843 = vmatpush1.msra.mxu0 0.0
        %844 = vmatprep.subr.mxu0 0.0
        %845 = vmatpush1.msra.mxu0 0.0
        %846 = vmatprep.subr.mxu0 0.0
        %847 = vmatpush1.msra.mxu0 0.0
        %848 = vmatprep.subr.mxu0 0.0
        %849 = vmatpush1.msra.mxu0 0.0
        %850 = vmatprep.subr.mxu0 0.0
        %851 = vmatpush1.msra.mxu0 0.0
        %852 = vmatprep.subr.mxu0 0.0
        %853 = vmatpush1.msra.mxu0 0.0
        %854 = vmatprep.subr.mxu0 0.0
        %855 = vmatpush1.msra.mxu0 0.0
        %856 = vmatprep.subr.mxu0 0.0
        %857 = vmatpush1.msra.mxu0 0.0
        %858 = vmatprep.subr.mxu0 0.0
        %859 = vmatpush1.msra.mxu0 0.0
        %860 = vmatprep.subr.mxu0 0.0
        %861 = vmatpush1.msra.mxu0 0.0
        %862 = vmatprep.subr.mxu0 0.0
        %863 = vmatpush1.msra.mxu0 0.0
        %864 = vmatprep.subr.mxu0 0.0
        %865 = vmatpush1.msra.mxu0 0.0
        %866 = vmatprep.subr.mxu0 0.0
        %867 = vmatpush1.msra.mxu0 %v800
        %868 = vmatprep.subr.mxu0 0.0
        %869 = vmatpush1.msra.mxu0 %v799
        %870 = vmatprep.subr.mxu0 0.0
        %871 = vmatpush1.msra.mxu0 %v798
        %872 = vmatprep.subr.mxu0 0.0
        %873 = vmatpush1.msra.mxu0 %v797
        %874 = vmatprep.subr.mxu0 0.0
        %875 = vmatpush2.msra.mxu0 0.0
        %876 = vmatprep.subr.mxu0 0.0
        %877 = vmatpush2.msra.mxu0 0.0
        %878 = vmatprep.subr.mxu0 0.0
        %879 = vmatpush2.msra.mxu0 0.0
        %880 = vmatprep.subr.mxu0 0.0
        %881 = vmatpush2.msra.mxu0 0.0
        %882 = vmatprep.subr.mxu0 0.0
        %883 = vmatpush2.msra.mxu0 0.0
        %884 = vmatprep.subr.mxu0 0.0
        %885 = vmatpush2.msra.mxu0 0.0
        %886 = vmatprep.subr.mxu0 0.0
        %887 = vmatpush2.msra.mxu0 0.0
        %888 = vmatprep.subr.mxu0 0.0
        %889 = vmatpush2.msra.mxu0 0.0
        %890 = vmatprep.subr.mxu0 0.0
        %891 = vmatpush2.msra.mxu0 0.0
        %892 = vmatprep.subr.mxu0 0.0
        %893 = vmatpush2.msra.mxu0 0.0
        %894 = vmatprep.subr.mxu0 0.0
        %895 = vmatpush2.msra.mxu0 0.0
        %896 = vmatprep.subr.mxu0 0.0
        %897 = vmatpush2.msra.mxu0 0.0
        %898 = vmatprep.subr.mxu0 0.0
        %899 = vmatpush2.msra.mxu0 0.0
        %900 = vmatprep.subr.mxu0 0.0
        %901 = vmatpush2.msra.mxu0 0.0
        %902 = vmatprep.subr.mxu0 0.0
        %903 = vmatpush2.msra.mxu0 0.0
        %904 = vmatprep.subr.mxu0 0.0
        %905 = vmatpush2.msra.mxu0 0.0
        %906 = vmatprep.mubr.f32.mxu0 0.0
        %907 = vmatmul.mubr.f32.gmra.mxu0 %v831
        %v908 = vpop.f32.mrf.mxu0
        %v909 = vadd.f32 %v812, %v908
        %v910 = vpop.f32.mrf.mxu0
        %911 = vmatprep.mubr.f32.mxu0 0.0
        %912 = vmatmul.mubr.f32.gmra.mxu0 %v834
        %v913 = vpop.f32.mrf.mxu0
        %v914 = vadd.f32 %v817, %v913
        %v915 = vpop.f32.mrf.mxu0
        %916 = vmatprep.mubr.f32.mxu0 0.0
        %917 = vmatmul.mubr.f32.gmra.mxu0 %v837
        %v918 = vpop.f32.mrf.mxu0
        %v919 = vadd.f32 %v822, %v918
        %v920 = vpop.f32.mrf.mxu0
        %921 = vmatprep.mubr.f32.mxu0 0.0
        %922 = vmatmul.mubr.f32.gmra.mxu0 %v840
        %v923 = vpop.f32.mrf.mxu0
        %v924 = vadd.f32 %v827, %v923
        %v925 = vpop.f32.mrf.mxu0
        %926 = vdwg.mxu0
        %v927 = vmax.f32 %v909, 0.0
        %v928 = vmax.f32 %v914, 0.0
        %v929 = vmax.f32 %v919, 0.0
        %v930 = vmax.f32 %v924, 0.0
        %v931 = vld [vmem:[%s9] sm:$0xff]
        %v932 = vld [vmem:[%s10] sm:$0xff]
        %934 = vset.pattern.permute.xlu0 0
        %935 = vperm.xlu0 %934, %v932
        %v936 = vpop.permute.xlu0 %935
        %v939 = vsel %vm829, %v931, 0
        %941 = vmatprep.subr.mxu0 0.0
        %942 = vmatpush1.msra.mxu0 0.0
        %943 = vmatprep.subr.mxu0 0.0
        %944 = vmatpush1.msra.mxu0 0.0
        %945 = vmatprep.subr.mxu0 0.0
        %946 = vmatpush1.msra.mxu0 0.0
        %947 = vmatprep.subr.mxu0 0.0
        %948 = vmatpush1.msra.mxu0 0.0
        %949 = vmatprep.subr.mxu0 0.0
        %950 = vmatpush1.msra.mxu0 0.0
        %951 = vmatprep.subr.mxu0 0.0
        %952 = vmatpush1.msra.mxu0 0.0
        %953 = vmatprep.subr.mxu0 0.0
        %954 = vmatpush1.msra.mxu0 0.0
        %955 = vmatprep.subr.mxu0 0.0
        %956 = vmatpush1.msra.mxu0 0.0
        %957 = vmatprep.subr.mxu0 0.0
        %958 = vmatpush1.msra.mxu0 0.0
        %959 = vmatprep.subr.mxu0 0.0
        %960 = vmatpush1.msra.mxu0 0.0
        %961 = vmatprep.subr.mxu0 0.0
        %962 = vmatpush1.msra.mxu0 0.0
        %963 = vmatprep.subr.mxu0 0.0
        %964 = vmatpush1.msra.mxu0 0.0
        %965 = vmatprep.subr.mxu0 0.0
        %966 = vmatpush1.msra.mxu0 %v930
        %967 = vmatprep.subr.mxu0 0.0
        %968 = vmatpush1.msra.mxu0 %v929
        %969 = vmatprep.subr.mxu0 0.0
        %970 = vmatpush1.msra.mxu0 %v928
        %971 = vmatprep.subr.mxu0 0.0
        %972 = vmatpush1.msra.mxu0 %v927
        %973 = vmatprep.subr.mxu0 0.0
        %974 = vmatpush2.msra.mxu0 0.0
        %975 = vmatprep.subr.mxu0 0.0
        %976 = vmatpush2.msra.mxu0 0.0
        %977 = vmatprep.subr.mxu0 0.0
        %978 = vmatpush2.msra.mxu0 0.0
        %979 = vmatprep.subr.mxu0 0.0
        %980 = vmatpush2.msra.mxu0 0.0
        %981 = vmatprep.subr.mxu0 0.0
        %982 = vmatpush2.msra.mxu0 0.0
        %983 = vmatprep.subr.mxu0 0.0
        %984 = vmatpush2.msra.mxu0 0.0
        %985 = vmatprep.subr.mxu0 0.0
        %986 = vmatpush2.msra.mxu0 0.0
        %987 = vmatprep.subr.mxu0 0.0
        %988 = vmatpush2.msra.mxu0 0.0
        %989 = vmatprep.subr.mxu0 0.0
        %990 = vmatpush2.msra.mxu0 0.0
        %991 = vmatprep.subr.mxu0 0.0
        %992 = vmatpush2.msra.mxu0 0.0
        %993 = vmatprep.subr.mxu0 0.0
        %994 = vmatpush2.msra.mxu0 0.0
        %995 = vmatprep.subr.mxu0 0.0
        %996 = vmatpush2.msra.mxu0 0.0
        %997 = vmatprep.subr.mxu0 0.0
        %998 = vmatpush2.msra.mxu0 0.0
        %999 = vmatprep.subr.mxu0 0.0
        %1000 = vmatpush2.msra.mxu0 0.0
        %1001 = vmatprep.subr.mxu0 0.0
        %1002 = vmatpush2.msra.mxu0 0.0
        %1003 = vmatprep.subr.mxu0 0.0
        %1004 = vmatpush2.msra.mxu0 0.0
        %1005 = vmatprep.mubr.f32.mxu0 0.0
        %1006 = vmatmul.mubr.f32.gmra.mxu0 %v939
        %v1007 = vpop.f32.mrf.mxu0
        %v1008 = vadd.f32 %v936, %v1007
        %v1009 = vpop.f32.mrf.mxu0
        %1010 = vdwg.mxu0
        %v1011 = vadd.f32 %v1008, 2.0
        %v1012 = vmul.f32 %v1011, 0.5
        %v1013 = vtanh.pop %v1012
        %v1014 = vadd.f32 %v1013, 1.0
        %v1015 = vmul.f32 %v1014, 0.5
        %v1016 = vadd.f32 %v1015, 1e-06
        %v1018 = vrot.slane %v1008, 4
        %v1020 = vadd.f32 %v559, %v1018
        %v1021 = vmul.f32 %v1020, %v1016
        %v1022 = vsel %vm583, %v559, %v1021
        %vm1023 = vcmask 130048
        %1024 = vst.msk [vmem:[%s450] sm:$0xff] %vm1023, %v1022
        %v1025 = vlaneseq
        %v1026 = vand.u32 %v1025, 127
        %s1027 = smul.u32 %s32, 16
        %v1028 = vstv %s1027
        %v1029 = vadd.s32 %v1026, %v1028
        %vm1030 = vcmp.lt.s32.totalorder %v1029, 16
        %v1031 = vlog2.pop %v1016
        %v1032 = vmul.f32 %v1031, 0.6931472
        %v1033 = vsel %vm1030, %v1032, 0.0
        %v1035 = vrot.slane %v1033, 4
        %vm1037 = vcmask 125952
        %v1038 = vsel %vm1037, %v1035, 0.0
        %1039 = vadd.xlane.f32.xlu0 %v1038
        %v1040 = vpop.xlane.xlu0 %1039
        %v1041 = vrot.slane %v1040, 4
        %v1042 = vadd.f32 %v1040, %v1041
        %v1043 = vrot.slane %v1042, 2
        %v1044 = vadd.f32 %v1042, %v1043
        %v1045 = vrot.slane %v1044, 1
        %v1046 = vadd.f32 %v1044, %v1045
        %s1047 = vtos %v1046
        %v1048 = vstv %s1047
        %vm1049 = vcmask 0
        %1050 = vst.msk [vmem:[%s478] sm:$0x1] %vm1049, %v1048
        %s1051 = sand.u32 %s294, 1
        %s1052 = scalar_lea.sflag [#allocation3], %s1051
        %s1053 = sand.u32 %s294, 1
        %s1054 = smul.addr %s1053, 8
        %s1055 = scalar_lea.vmem [#allocation2], %s1054
        %p1056 = scmp.lt.s32.totalorder %s31, 1
        %s1057 = scalar_select %p1056, %s31, 1
        %p1058 = scmp.lt.s32.totalorder %s32, 0
        %s1059 = scalar_select %p1058, %s32, 0
        %s1060 = sadd.s32 %s1059, %s1057
        %s1061 = scalar_lea.vmem %s12, %s1060
        // Predicated region
        $region65: #{flowstep_forward.1} parent=63 // pred_check
          %p1062 = pneg %p304
        $region66: #{flowstep_forward.1} parent=63 // pred_check_branch
          %1064 = sbr.rel (%p1062) target = $region68
        $region67: #{flowstep_forward.1} parent=63 // pred_region
          %s1066 = ssub.s32 128, 128
          %1067 = vsyncadd %s1052, %s1066
          %s1068 = sadd.s32 %s32, %s31
          %s1069 = smul.addr %s1068, 128
          %s1070 = scalar_lea.hbm %s11, %s1069
          %s1072 = sshll.u32 %s1055, 4
          %s1073 = int_to_ptr.vmem [resolvable:$true] %s1072
          %1075 = dma.vmem_to_hbm [thread:$0]  %s1073, 128, %s1070, %s1052
        $region68: #{flowstep_forward.1} parent=63 // pred_fallthru
          _
        // Predicated region
        $region69: #{flowstep_forward.1} parent=63 // pred_check
          %p1076 = pneg %p332
        $region70: #{flowstep_forward.1} parent=63 // pred_check_branch
          %1078 = sbr.rel (%p1076) target = $region72
        $region71: #{flowstep_forward.1} parent=63 // pred_region
          _
        $region72: #{flowstep_forward.1} parent=63 // pred_fallthru
          _
      $region64: #{flowstep_forward.1} parent=5 // pred_fallthru
        _
      %p1079 = scmp.le.s32.totalorder 2, %s22
      // Predicated region
      $region73: #{flowstep_forward.1} parent=5 // pred_check
        %p1080 = pneg %p1079
      $region74: #{flowstep_forward.1} parent=5 // pred_check_branch
        %1082 = sbr.rel (%p1080) target = $region76
      $region75: #{flowstep_forward.1} parent=5 // pred_region
        %s1083 = ssub.s32 %s22, 2
        // Predicated region
        $region77: #{flowstep_forward.1} parent=75 // pred_check
          %p1084 = pneg %p310
        $region78: #{flowstep_forward.1} parent=75 // pred_check_branch
          %1086 = sbr.rel (%p1084) target = $region80
        $region79: #{flowstep_forward.1} parent=75 // pred_region
          %s1087 = sand.u32 %s295, 1
          %s1088 = scalar_lea.sflag [#allocation3], %s1087
          %s1089 = sand.u32 %s295, 1
          %s1090 = smul.addr %s1089, 8
          %s1091 = scalar_lea.vmem [#allocation2], %s1090
          %1092 = dma.done %s1088, 128
        $region80: #{flowstep_forward.1} parent=75 // pred_fallthru
          _
        // Predicated region
        $region81: #{flowstep_forward.1} parent=75 // pred_check
          %p1093 = pneg %p338
        $region82: #{flowstep_forward.1} parent=75 // pred_check_branch
          %1095 = sbr.rel (%p1093) target = $region84
        $region83: #{flowstep_forward.1} parent=75 // pred_region
          %p1096 = scmp.lt.s32.totalorder %s33, 1
          %s1097 = scalar_select %p1096, %s33, 1
          %p1098 = scmp.lt.s32.totalorder %s34, 0
          %s1099 = scalar_select %p1098, %s34, 0
          %s1100 = sadd.s32 %s1099, %s1097
          %s1101 = scalar_lea.vmem %s12, %s1100
        $region84: #{flowstep_forward.1} parent=75 // pred_fallthru
          _
      $region76: #{flowstep_forward.1} parent=5 // pred_fallthru
        _
    $region6: #{flowstep_forward.1} parent=1 // loop_footer
      %s26 = sadd.s32 1, %s22
    $region7: #{flowstep_forward.1} parent=1 // loop_footer_branch
      %21 = sbr.rel target = $region3
    $region8: #{flowstep_forward.1} parent=1 // loop_exit
      _
    %1102 = vsyncpa [#allocation3], 1
    %s1103 = scalar_lea.sflag [#allocation3], 1
    %1104 = vsyncpa %s1103, 1

</llo_original>
